<compile_context>
chip_gen: v6e
topology: v6e:2x2x1
jax: 0.10.0
libtpu: 0.0.40
codegen_flags: <defaults>
</compile_context>

<pallas_src>
import functools

import jax
import jax.numpy as jnp
from jax import lax
from jax.experimental import pallas as pl
from jax.experimental.pallas import tpu as pltpu


def _round_up(x, m):
    return (x + m - 1) // m * m


# ---------------------------------------------------------------------------
# Kernel 1: GRU recurrence (PyTorch nn.GRU gate semantics, batch_first),
# pipelined over time chunks. Activations are time-major 2D:
# row (t * B_pad + b) == (timestep t, batch b).
# ---------------------------------------------------------------------------
def _gru_kernel(x_ref, h0_ref, wih_ref, whh_ref, bgi_ref, bhn_ref,
                hseq_ref, hout_ref, h_sc, gi_sc,
                *, chunk_steps, b_pad, hidden, seq_len):
    c = pl.program_id(0)
    TC, B, H = chunk_steps, b_pad, hidden

    @pl.when(c == 0)
    def _():
        h_sc[...] = h0_ref[...]

    # relu on the GRU *input* (matches the module), then ONE fused x-path
    # gate matmul for the whole chunk: (TC*B, H) x (H, 3H) -> (TC*B, 3H).
    # Contraction is on dim 1 of both operands, so w_ih stays (3H, H) and no
    # transposed copy is ever materialized.
    x = jnp.maximum(x_ref[...], 0).astype(jnp.bfloat16)
    gi_sc[...] = lax.dot_general(
        x, wih_ref[...], (((1,), (1,)), ((), ())),
        preferred_element_type=jnp.float32) + bgi_ref[...]

    whh = whh_ref[...]                                  # (3H, H) bf16, resident
    b_hn = jnp.broadcast_to(bhn_ref[...], (B, H))       # hoisted broadcast
    base_t = c * TC

    def step(t, h):
        row = pl.multiple_of(t * B, B)                  # aligned slab offset
        gi = gi_sc[pl.ds(row, B), :]                    # (B, 3H) f32
        # ONE fused hidden-path matmul per step (was 3 tiny matmuls).
        gh = lax.dot_general(
            h.astype(jnp.bfloat16), whh, (((1,), (1,)), ((), ())),
            preferred_element_type=jnp.float32)         # (B, 3H) f32
        r = jax.nn.sigmoid(gi[:, 0:H] + gh[:, 0:H])
        z = jax.nn.sigmoid(gi[:, H:2 * H] + gh[:, H:2 * H])
        n = jnp.tanh(gi[:, 2 * H:3 * H] + r * (gh[:, 2 * H:3 * H] + b_hn))
        h_new = (1.0 - z) * n + z * h
        # Freeze h on padded timesteps (when S is not a multiple of the chunk).
        keep = (base_t + t < seq_len).astype(jnp.float32)
        h_new = keep * h_new + (1.0 - keep) * h
        hseq_ref[pl.ds(row, B), :] = h_new.astype(hseq_ref.dtype)
        return h_new

    unroll = True if TC <= 16 else 8
    h = lax.fori_loop(0, TC, step, h_sc[...], unroll=unroll)
    h_sc[...] = h
    hout_ref[...] = h


# ---------------------------------------------------------------------------
# Kernel 2: tiled vocab head, pass 1 — bf16 logits tiles + running lse.
# grid = (row tiles, vocab tiles); vocab axis is the "arbitrary" accumulation
# axis; lse output block stays resident across it (flash-attention pattern).
# ---------------------------------------------------------------------------
def _head_logits_kernel(x_ref, w_ref, b_ref, logits_ref, lse_ref, m_sc, l_sc,
                        *, tile_v, v_real):
    j = pl.program_id(1)

    @pl.when(j == 0)
    def _():
        m_sc[...] = jnp.full_like(m_sc[...], -jnp.inf)
        l_sc[...] = jnp.zeros_like(l_sc[...])

    # x (TM, H) bf16  X  w (TV, H) bf16, contracting on H (transposed-RHS is
    # native on the MXU) -> (TM, TV) f32.
    logits = lax.dot_general(
        x_ref[...], w_ref[...], (((1,), (1,)), ((), ())),
        preferred_element_type=jnp.float32) + b_ref[...]
    logits_ref[...] = logits.astype(logits_ref.dtype)   # bf16 intermediate

    # Mask vocab-padding columns so they never contribute to max / sum-exp
    # (robust even if a tile were fully padded).
    col = j * tile_v + lax.broadcasted_iota(jnp.int32, logits.shape, 1)
    masked = jnp.where(col < v_real, logits, -jnp.inf)

    m_prev = m_sc[...]
    m_new = jnp.maximum(m_prev, jnp.max(masked, axis=-1, keepdims=True))
    l_sc[...] = (l_sc[...] * jnp.exp(m_prev - m_new)
                 + jnp.sum(jnp.exp(masked - m_new), axis=-1, keepdims=True))
    m_sc[...] = m_new

    @pl.when(j == pl.num_programs(1) - 1)
    def _():
        lse_ref[...] = m_sc[...] + jnp.log(l_sc[...])


# Kernel 3: pass 2 — subtract lse, emit f32 log-probs (both axes parallel).
def _head_normalize_kernel(logits_ref, lse_ref, out_ref):
    out_ref[...] = logits_ref[...].astype(jnp.float32) - lse_ref[...]


# ---------------------------------------------------------------------------
# Wrapper
# ---------------------------------------------------------------------------
def decoder_rnn_forward(input_t, hidden_t, params, n_layers=1):
    """input_t: (B, S) int32 token ids; hidden_t: (1, B, H) float32.

    Returns (log_probs (B, S, V) f32, hidden (1, B, H) f32) like the module.
    """
    f32, bf16 = jnp.float32, jnp.bfloat16
    emb_table = params["embedding"]   # (V, H)
    B, S = input_t.shape
    V, H = emb_table.shape

    VMEM_LIMIT = 48 * 1024 * 1024     # leaves headroom on v7x (64 MiB physical)

    # ---- GRU sizing: pad batch to sublane multiple, chunk the time axis ----
    B_pad = _round_up(max(B, 1), 8)
    TC = max(1, min(S, max(1, 512 // B_pad)))     # ~512 rows per chunk matmul
    S_pad = _round_up(S, TC)
    n_chunks = S_pad // TC

    # ---- glue (plain JAX): embedding gather + weight/bias layout prep -----
    # TODO(synk): fuse the embedding gather into kernel 1 via scalar-prefetch
    # row-gather (pl.Element) BlockSpec; it is left to XLA here (in bf16).
    x_tb = emb_table.astype(bf16)[input_t.T]                      # (S, B, H)
    x_tb = jnp.pad(x_tb, ((0, S_pad - S), (0, B_pad - B), (0, 0)))
    x_rows = x_tb.reshape(S_pad * B_pad, H)                       # time-major

    h = jnp.pad(hidden_t.reshape(B, H).astype(f32),
                ((0, B_pad - B), (0, 0)))                         # (B_pad, H)

    w_ih = params["w_ih"].astype(bf16)      # (3H, H), gate order [r, z, n]
    w_hh = params["w_hh"].astype(bf16)      # (3H, H)
    b_ih = params["b_ih"].astype(f32)
    b_hh = params["b_hh"].astype(f32)
    # r/z gate biases pre-combined; n-gate keeps b_in here, b_hn applied
    # inside r*(...) per GRU semantics.
    b_gi = jnp.concatenate([b_ih[0:H] + b_hh[0:H],
                            b_ih[H:2 * H] + b_hh[H:2 * H],
                            b_ih[2 * H:3 * H]]).reshape(1, 3 * H)
    b_hn = b_hh[2 * H:3 * H].reshape(1, H)

    # ---- kernel 1: GRU recurrence, pipelined over time chunks -------------
    # TODO(synk): on v7x a leading batch-tile "parallel" grid axis would use
    # both TensorCores; omitted here to keep the time-major slab layout.
    gru = pl.pallas_call(
        functools.partial(_gru_kernel, chunk_steps=TC, b_pad=B_pad,
                          hidden=H, seq_len=S),
        out_shape=(jax.ShapeDtypeStruct((S_pad * B_pad, H), bf16),   # hseq
                   jax.ShapeDtypeStruct((B_pad, H), f32)),           # h final
        grid_spec=pltpu.PrefetchScalarGridSpec(
            num_scalar_prefetch=0,
            grid=(n_chunks,),
            in_specs=[pl.BlockSpec((TC * B_pad, H), lambda c: (c, 0)),  # x
                      pl.BlockSpec((B_pad, H), lambda c: (0, 0)),       # h0
                      pl.BlockSpec((3 * H, H), lambda c: (0, 0)),       # w_ih
                      pl.BlockSpec((3 * H, H), lambda c: (0, 0)),       # w_hh
                      pl.BlockSpec((1, 3 * H), lambda c: (0, 0)),       # b_gi
                      pl.BlockSpec((1, H), lambda c: (0, 0))],          # b_hn
            out_specs=[pl.BlockSpec((TC * B_pad, H), lambda c: (c, 0)),
                       pl.BlockSpec((B_pad, H), lambda c: (0, 0))],
            scratch_shapes=[pltpu.VMEM((B_pad, H), f32),                # h carry
                            pltpu.VMEM((TC * B_pad, 3 * H), f32)]),     # gates
        compiler_params=pltpu.CompilerParams(
            dimension_semantics=("arbitrary",),
            vmem_limit_bytes=VMEM_LIMIT),
    )

    hseq = x_rows
    for _ in range(n_layers):          # same weights each pass (as in PyTorch)
        hseq, h = gru(hseq if _ else x_rows, h, w_ih, w_hh, b_gi, b_hn)

    # ---- kernels 2+3: tiled output head (linear + log-softmax) ------------
    # Rows in (batch, time) order so the big (B*S, V) output never needs a
    # transpose afterwards (only the small hseq is transposed, in XLA).
    head_x = (hseq.reshape(S_pad, B_pad, H)
              .transpose(1, 0, 2)[:B, :S].reshape(B * S, H))          # bf16

    M = B * S
    TM = min(_round_up(M, 8), 512)            # larger row tiles (review)
    M_pad = _round_up(M, TM)
    V_pad = _round_up(V, 128)                 # lane-dense vocab tiles
    TV = min(1024, V_pad)                     # larger vocab tiles (review)
    V_pad = _round_up(V_pad, TV)
    n_m = M_pad // TM
    n_v = V_pad // TV

    x_p = jnp.pad(head_x, ((0, M_pad - M), (0, 0)))                   # bf16
    # w_lin fed as (V, H) directly -- no transposed (H, V) copy materialized.
    w_p = jnp.pad(params["w_lin"].astype(bf16), ((0, V_pad - V), (0, 0)))
    b_p = jnp.pad(params["b_lin"].astype(f32), (0, V_pad - V)).reshape(1, V_pad)

    logits_bf16, lse = pl.pallas_call(
        functools.partial(_head_logits_kernel, tile_v=TV, v_real=V),
        out_shape=(jax.ShapeDtypeStruct((M_pad, V_pad), bf16),
                   jax.ShapeDtypeStruct((M_pad, 1), f32)),
        grid_spec=pltpu.PrefetchScalarGridSpec(
            num_scalar_prefetch=0,
            grid=(n_m, n_v),
            in_specs=[pl.BlockSpec((TM, H), lambda i, j: (i, 0)),
                      pl.BlockSpec((TV, H), lambda i, j: (j, 0)),
                      pl.BlockSpec((1, TV), lambda i, j: (0, j))],
            out_specs=[pl.BlockSpec((TM, TV), lambda i, j: (i, j)),
                       pl.BlockSpec((TM, 1), lambda i, j: (i, 0))],
            scratch_shapes=[pltpu.VMEM((TM, 1), f32),
                            pltpu.VMEM((TM, 1), f32)]),
        compiler_params=pltpu.CompilerParams(
            dimension_semantics=("parallel", "arbitrary"),
            vmem_limit_bytes=VMEM_LIMIT),
    )(x_p, w_p, b_p)

    log_probs_p = pl.pallas_call(
        _head_normalize_kernel,
        out_shape=jax.ShapeDtypeStruct((M_pad, V_pad), f32),
        grid_spec=pltpu.PrefetchScalarGridSpec(
            num_scalar_prefetch=0,
            grid=(n_m, n_v),
            in_specs=[pl.BlockSpec((TM, TV), lambda i, j: (i, j)),
                      pl.BlockSpec((TM, 1), lambda i, j: (i, 0))],
            out_specs=pl.BlockSpec((TM, TV), lambda i, j: (i, j))),
        compiler_params=pltpu.CompilerParams(
            dimension_semantics=("parallel", "parallel"),
            vmem_limit_bytes=VMEM_LIMIT),
    )(logits_bf16, lse)

    out = log_probs_p[:M, :V].reshape(B, S, V)
    return out, h[:B].reshape(1, B, H)


# ---------------------------------------------------------------------------
# Params + pure-JAX reference (self-check)
# ---------------------------------------------------------------------------
def init_params(key, vocab_size, hidden_size):
    """Deterministic synthetic parameters (PyTorch-like uniform init)."""
    keys = jax.random.split(key, 7)
    bound = 1.0 / (hidden_size ** 0.5)

    def u(kk, shape):
        return jax.random.uniform(kk, shape, jnp.float32, -bound, bound)

    return {
        "embedding": jax.random.normal(keys[0], (vocab_size, hidden_size),
                                       jnp.float32),
        "w_ih": u(keys[1], (3 * hidden_size, hidden_size)),
        "w_hh": u(keys[2], (3 * hidden_size, hidden_size)),
        "b_ih": u(keys[3], (3 * hidden_size,)),
        "b_hh": u(keys[4], (3 * hidden_size,)),
        "w_lin": u(keys[5], (vocab_size, hidden_size)),
        "b_lin": u(keys[6], (vocab_size,)),
    }


def _reference_forward(input_t, hidden_t, params, n_layers=1):
    """Pure-JAX f32 reference mirroring the PyTorch DecoderRNN.forward."""
    H = params["w_hh"].shape[1]
    x = params["embedding"][input_t].astype(jnp.float32)   # (B, S, H)
    h = hidden_t[0].astype(jnp.float32)                    # (B, H)
    w_ih, w_hh = params["w_ih"], params["w_hh"]
    b_ih, b_hh = params["b_ih"], params["b_hh"]
    for _ in range(n_layers):
        xl = jnp.maximum(x, 0.0)
        hs = []
        for t in range(x.shape[1]):
            gi = xl[:, t, :] @ w_ih.T + b_ih
            gh = h @ w_hh.T + b_hh
            r = jax.nn.sigmoid(gi[:, :H] + gh[:, :H])
            z = jax.nn.sigmoid(gi[:, H:2 * H] + gh[:, H:2 * H])
            n = jnp.tanh(gi[:, 2 * H:] + r * gh[:, 2 * H:])
            h = (1.0 - z) * n + z * h
            hs.append(h)
        x = jnp.stack(hs, axis=1)
    logits = x @ params["w_lin"].T + params["b_lin"]
    return jax.nn.log_softmax(logits, axis=-1), h[None]


if __name__ == "__main__":
    B, S, H, V = 2, 8, 32, 64
    key = jax.random.PRNGKey(0)
    pkey, ikey = jax.random.split(key)

    params = init_params(pkey, V, H)
    input_t = jax.random.randint(ikey, (B, S), 0, V, dtype=jnp.int32)
    hidden_t = jnp.zeros((1, B, H), jnp.float32)   # DecoderRNN.initHidden-style

    fwd = jax.jit(functools.partial(decoder_rnn_forward, n_layers=1))
    out, h_out = fwd(input_t, hidden_t, params)
    jax.block_until_ready((out, h_out))

    assert out.shape == (B, S, V)
    assert h_out.shape == (1, B, H)

    ref_out, ref_h = _reference_forward(input_t, hidden_t, params, n_layers=1)
    # bf16 MXU operands / bf16 activation storage introduce ~1e-2-level drift
    # vs. the all-f32 reference.
    assert float(jnp.max(jnp.abs(out - ref_out))) < 7.5e-2
    assert float(jnp.max(jnp.abs(h_out - ref_h))) < 5e-2
    print("KERNEL_OK")
</pallas_src>

<mosaic_0001>
module attributes {stable_mosaic.version = 11 : i64} {
  func.func @_head_normalize_kernel(%arg0: i32, %arg1: i32, %arg2: memref<16x128xbf16, #tpu.memory_space<vmem>>, %arg3: memref<16x1xf32, #tpu.memory_space<vmem>>, %arg4: memref<16x128xf32, #tpu.memory_space<vmem>>) attributes {dimension_semantics = [#tpu.dimension_semantics<parallel>, #tpu.dimension_semantics<parallel>], iteration_bounds = array<i64: 1, 1>, scalar_prefetch = 0 : i64, scratch_operands = 0 : i64, tpu.core_type = #tpu.core_type<tc>, window_params = [{transform_indices = @transform_0, window_bounds = array<i64: 16, 128>}, {transform_indices = @transform_1, window_bounds = array<i64: 16, 1>}, {transform_indices = @transform_2, window_bounds = array<i64: 16, 128>}]} {
    %c0 = arith.constant 0 : index
    %c0_0 = arith.constant 0 : index
    %0 = vector.load %arg2[%c0, %c0_0] : memref<16x128xbf16, #tpu.memory_space<vmem>>, vector<16x128xbf16>
    %1 = arith.extf %0 : vector<16x128xbf16> to vector<16x128xf32>
    %c0_1 = arith.constant 0 : index
    %c0_2 = arith.constant 0 : index
    %2 = vector.load %arg3[%c0_1, %c0_2] : memref<16x1xf32, #tpu.memory_space<vmem>>, vector<16x1xf32>
    %3 = vector.broadcast %2 : vector<16x1xf32> to vector<16x128xf32>
    %4 = arith.subf %1, %3 : vector<16x128xf32>
    %c0_3 = arith.constant 0 : index
    %c0_4 = arith.constant 0 : index
    %5 = vector.load %arg4[%c0_3, %c0_4] : memref<16x128xf32, #tpu.memory_space<vmem>>, vector<16x128xf32>
    tpu.vector_store %arg4[%c0_3, %c0_4], %4 {strides = array<i32>} : memref<16x128xf32, #tpu.memory_space<vmem>>, vector<16x128xf32>,
    return
  }
  func.func @transform_0(%arg0: i32, %arg1: i32) -> (i32, i32) {
    %c0_i32 = arith.constant 0 : i32
    return %arg0, %arg1 : i32, i32
  }
  func.func @transform_1(%arg0: i32, %arg1: i32) -> (i32, i32) {
    %c0_i32 = arith.constant 0 : i32
    %c0_i32_0 = arith.constant 0 : i32
    return %arg0, %c0_i32 : i32, i32
  }
  func.func @transform_2(%arg0: i32, %arg1: i32) -> (i32, i32) {
    %c0_i32 = arith.constant 0 : i32
    return %arg0, %arg1 : i32, i32
  }
}

module attributes {stable_mosaic.version = 11 : i64} {
  func.func @_head_logits_kernel(%arg0: i32, %arg1: i32, %arg2: memref<16x32xbf16, #tpu.memory_space<vmem>>, %arg3: memref<128x32xbf16, #tpu.memory_space<vmem>>, %arg4: memref<1x128xf32, #tpu.memory_space<vmem>>, %arg5: memref<16x128xbf16, #tpu.memory_space<vmem>>, %arg6: memref<16x1xf32, #tpu.memory_space<vmem>>, %arg7: memref<16x1xf32, #tpu.memory_space<vmem>>, %arg8: memref<16x1xf32, #tpu.memory_space<vmem>>) attributes {dimension_semantics = [#tpu.dimension_semantics<parallel>, #tpu.dimension_semantics<arbitrary>], iteration_bounds = array<i64: 1, 1>, scalar_prefetch = 0 : i64, scratch_operands = 2 : i64, tpu.core_type = #tpu.core_type<tc>, window_params = [{transform_indices = @transform_0, window_bounds = array<i64: 16, 32>}, {transform_indices = @transform_1, window_bounds = array<i64: 128, 32>}, {transform_indices = @transform_2, window_bounds = array<i64: 1, 128>}, {transform_indices = @transform_3, window_bounds = array<i64: 16, 128>}, {transform_indices = @transform_4, window_bounds = array<i64: 16, 1>}]} {
    %c0_i32 = arith.constant 0 : i32
    %0 = arith.cmpi eq, %arg1, %c0_i32 : i32
    %1 = arith.extui %0 : i1 to i32
    %c0_i32_0 = arith.constant 0 : i32
    %2 = arith.cmpi ne, %1, %c0_i32_0 : i32
    scf.if %2 {
      %cst_21 = arith.constant 0xFF800000 : f32
      %38 = vector.broadcast %cst_21 : f32 to vector<16x1xf32>
      %c0_22 = arith.constant 0 : index
      %c0_23 = arith.constant 0 : index
      %39 = vector.load %arg7[%c0_22, %c0_23] : memref<16x1xf32, #tpu.memory_space<vmem>>, vector<16x1xf32>
      tpu.vector_store %arg7[%c0_22, %c0_23], %38 {strides = array<i32>} : memref<16x1xf32, #tpu.memory_space<vmem>>, vector<16x1xf32>,
      %cst_24 = arith.constant 0.000000e+00 : f32
      %40 = vector.broadcast %cst_24 : f32 to vector<16x1xf32>
      %c0_25 = arith.constant 0 : index
      %c0_26 = arith.constant 0 : index
      %41 = vector.load %arg8[%c0_25, %c0_26] : memref<16x1xf32, #tpu.memory_space<vmem>>, vector<16x1xf32>
      tpu.vector_store %arg8[%c0_25, %c0_26], %40 {strides = array<i32>} : memref<16x1xf32, #tpu.memory_space<vmem>>, vector<16x1xf32>,
    } else {
    }
    %c0 = arith.constant 0 : index
    %c0_1 = arith.constant 0 : index
    %3 = vector.load %arg2[%c0, %c0_1] : memref<16x32xbf16, #tpu.memory_space<vmem>>, vector<16x32xbf16>
    %c0_2 = arith.constant 0 : index
    %c0_3 = arith.constant 0 : index
    %4 = vector.load %arg3[%c0_2, %c0_3] : memref<128x32xbf16, #tpu.memory_space<vmem>>, vector<128x32xbf16>
    %cst = arith.constant dense<0.000000e+00> : vector<16x128xf32>
    %5 = tpu.matmul %3, %4, %cst {dimension_numbers = #tpu.dot_dimension_numbers<[1], [1], [0], [0], [0, 0, 1, 0], [], []>} : vector<16x32xbf16>, vector<128x32xbf16>, vector<16x128xf32> -> vector<16x128xf32>
    %c0_4 = arith.constant 0 : index
    %c0_5 = arith.constant 0 : index
    %6 = vector.load %arg4[%c0_4, %c0_5] : memref<1x128xf32, #tpu.memory_space<vmem>>, vector<1x128xf32>
    %7 = vector.broadcast %6 : vector<1x128xf32> to vector<16x128xf32>
    %8 = arith.addf %5, %7 : vector<16x128xf32>
    %9 = arith.truncf %8 : vector<16x128xf32> to vector<16x128xbf16>
    %c0_6 = arith.constant 0 : index
    %c0_7 = arith.constant 0 : index
    %10 = vector.load %arg5[%c0_6, %c0_7] : memref<16x128xbf16, #tpu.memory_space<vmem>>, vector<16x128xbf16>
    tpu.vector_store %arg5[%c0_6, %c0_7], %9 {strides = array<i32>} : memref<16x128xbf16, #tpu.memory_space<vmem>>, vector<16x128xbf16>,
    %c128_i32 = arith.constant 128 : i32
    %11 = arith.muli %arg1, %c128_i32 : i32
    %12 = tpu.iota {dimensions = array<i32: 1>} : vector<16x128xi32>
    %13 = vector.broadcast %11 : i32 to vector<16x128xi32>
    %14 = arith.addi %13, %12 : vector<16x128xi32>
    %c64_i32 = arith.constant 64 : i32
    %15 = vector.broadcast %c64_i32 : i32 to vector<16x128xi32>
    %16 = arith.cmpi slt, %14, %15 : vector<16x128xi32>
    %cst_8 = arith.constant 0xFF800000 : f32
    %17 = vector.broadcast %cst_8 : f32 to vector<16x128xf32>
    %18 = arith.select %16, %8, %17 : vector<16x128xi1>, vector<16x128xf32>
    %c0_9 = arith.constant 0 : index
    %c0_10 = arith.constant 0 : index
    %19 = vector.load %arg7[%c0_9, %c0_10] : memref<16x1xf32, #tpu.memory_space<vmem>>, vector<16x1xf32>
    %cst_11 = arith.constant dense<0xFF800000> : vector<16xf32>
    %20 = vector.multi_reduction <maximumf>, %18, %cst_11 [1] : vector<16x128xf32> to vector<16xf32>
    %21 = vector.shape_cast %20 : vector<16xf32> to vector<16x1xf32>
    %22 = arith.maximumf %19, %21 : vector<16x1xf32>
    %c0_12 = arith.constant 0 : index
    %c0_13 = arith.constant 0 : index
    %23 = vector.load %arg8[%c0_12, %c0_13] : memref<16x1xf32, #tpu.memory_space<vmem>>, vector<16x1xf32>
    %24 = arith.subf %19, %22 : vector<16x1xf32>
    %25 = math.exp %24 : vector<16x1xf32>
    %26 = arith.mulf %23, %25 : vector<16x1xf32>
    %27 = vector.broadcast %22 : vector<16x1xf32> to vector<16x128xf32>
    %28 = arith.subf %18, %27 : vector<16x128xf32>
    %29 = math.exp %28 : vector<16x128xf32>
    %cst_14 = arith.constant dense<0.000000e+00> : vector<16xf32>
    %30 = vector.multi_reduction <add>, %29, %cst_14 [1] : vector<16x128xf32> to vector<16xf32>
    %31 = vector.shape_cast %30 : vector<16xf32> to vector<16x1xf32>
    %32 = arith.addf %26, %31 : vector<16x1xf32>
    %c0_15 = arith.constant 0 : index
    %c0_16 = arith.constant 0 : index
    %33 = vector.load %arg8[%c0_15, %c0_16] : memref<16x1xf32, #tpu.memory_space<vmem>>, vector<16x1xf32>
    tpu.vector_store %arg8[%c0_15, %c0_16], %32 {strides = array<i32>} : memref<16x1xf32, #tpu.memory_space<vmem>>, vector<16x1xf32>,
    %c0_17 = arith.constant 0 : index
    %c0_18 = arith.constant 0 : index
    %34 = vector.load %arg7[%c0_17, %c0_18] : memref<16x1xf32, #tpu.memory_space<vmem>>, vector<16x1xf32>
    tpu.vector_store %arg7[%c0_17, %c0_18], %22 {strides = array<i32>} : memref<16x1xf32, #tpu.memory_space<vmem>>, vector<16x1xf32>,
    %c0_i32_19 = arith.constant 0 : i32
    %35 = arith.cmpi eq, %arg1, %c0_i32_19 : i32
    %36 = arith.extui %35 : i1 to i32
    %c0_i32_20 = arith.constant 0 : i32
    %37 = arith.cmpi ne, %36, %c0_i32_20 : i32
    scf.if %37 {
      %c0_21 = arith.constant 0 : index
      %c0_22 = arith.constant 0 : index
      %38 = vector.load %arg7[%c0_21, %c0_22] : memref<16x1xf32, #tpu.memory_space<vmem>>, vector<16x1xf32>
      %c0_23 = arith.constant 0 : index
      %c0_24 = arith.constant 0 : index
      %39 = vector.load %arg8[%c0_23, %c0_24] : memref<16x1xf32, #tpu.memory_space<vmem>>, vector<16x1xf32>
      %40 = math.log %39 : vector<16x1xf32>
      %41 = arith.addf %38, %40 : vector<16x1xf32>
      %c0_25 = arith.constant 0 : index
      %c0_26 = arith.constant 0 : index
      %42 = vector.load %arg6[%c0_25, %c0_26] : memref<16x1xf32, #tpu.memory_space<vmem>>, vector<16x1xf32>
      tpu.vector_store %arg6[%c0_25, %c0_26], %41 {strides = array<i32>} : memref<16x1xf32, #tpu.memory_space<vmem>>, vector<16x1xf32>,
    } else {
    }
    return
  }
  func.func @transform_0(%arg0: i32, %arg1: i32) -> (i32, i32) {
    %c0_i32 = arith.constant 0 : i32
    %c0_i32_0 = arith.constant 0 : i32
    return %arg0, %c0_i32 : i32, i32
  }
  func.func @transform_1(%arg0: i32, %arg1: i32) -> (i32, i32) {
    %c0_i32 = arith.constant 0 : i32
    %c0_i32_0 = arith.constant 0 : i32
    return %arg1, %c0_i32 : i32, i32
  }
  func.func @transform_2(%arg0: i32, %arg1: i32) -> (i32, i32) {
    %c0_i32 = arith.constant 0 : i32
    %c0_i32_0 = arith.constant 0 : i32
    return %c0_i32, %arg1 : i32, i32
  }
  func.func @transform_3(%arg0: i32, %arg1: i32) -> (i32, i32) {
    %c0_i32 = arith.constant 0 : i32
    return %arg0, %arg1 : i32, i32
  }
  func.func @transform_4(%arg0: i32, %arg1: i32) -> (i32, i32) {
    %c0_i32 = arith.constant 0 : i32
    %c0_i32_0 = arith.constant 0 : i32
    return %arg0, %c0_i32 : i32, i32
  }
}

module attributes {stable_mosaic.version = 11 : i64} {
  func.func @_gru_kernel(%arg0: i32, %arg1: memref<64x32xbf16, #tpu.memory_space<vmem>>, %arg2: memref<8x32xf32, #tpu.memory_space<vmem>>, %arg3: memref<96x32xbf16, #tpu.memory_space<vmem>>, %arg4: memref<96x32xbf16, #tpu.memory_space<vmem>>, %arg5: memref<1x96xf32, #tpu.memory_space<vmem>>, %arg6: memref<1x32xf32, #tpu.memory_space<vmem>>, %arg7: memref<64x32xbf16, #tpu.memory_space<vmem>>, %arg8: memref<8x32xf32, #tpu.memory_space<vmem>>, %arg9: memref<8x32xf32, #tpu.memory_space<vmem>>, %arg10: memref<64x96xf32, #tpu.memory_space<vmem>>) attributes {dimension_semantics = [#tpu.dimension_semantics<arbitrary>], iteration_bounds = array<i64: 1>, scalar_prefetch = 0 : i64, scratch_operands = 2 : i64, tpu.core_type = #tpu.core_type<tc>, window_params = [{transform_indices = @transform_0, window_bounds = array<i64: 64, 32>}, {pipeline_mode = #tpu.pipeline_mode<synchronous>, transform_indices = @transform_1, window_bounds = array<i64: 8, 32>}, {pipeline_mode = #tpu.pipeline_mode<synchronous>, transform_indices = @transform_2, window_bounds = array<i64: 96, 32>}, {pipeline_mode = #tpu.pipeline_mode<synchronous>, transform_indices = @transform_3, window_bounds = array<i64: 96, 32>}, {pipeline_mode = #tpu.pipeline_mode<synchronous>, transform_indices = @transform_4, window_bounds = array<i64: 1, 96>}, {pipeline_mode = #tpu.pipeline_mode<synchronous>, transform_indices = @transform_5, window_bounds = array<i64: 1, 32>}, {transform_indices = @transform_6, window_bounds = array<i64: 64, 32>}, {pipeline_mode = #tpu.pipeline_mode<synchronous>, transform_indices = @transform_7, window_bounds = array<i64: 8, 32>}]} {
    %c0_i32 = arith.constant 0 : i32
    %0 = arith.cmpi eq, %arg0, %c0_i32 : i32
    %1 = arith.extui %0 : i1 to i32
    %c0_i32_0 = arith.constant 0 : i32
    %2 = arith.cmpi ne, %1, %c0_i32_0 : i32
    scf.if %2 {
      %c0_93 = arith.constant 0 : index
      %c0_94 = arith.constant 0 : index
      %388 = vector.load %arg2[%c0_93, %c0_94] : memref<8x32xf32, #tpu.memory_space<vmem>>, vector<8x32xf32>
      %c0_95 = arith.constant 0 : index
      %c0_96 = arith.constant 0 : index
      %389 = vector.load %arg9[%c0_95, %c0_96] : memref<8x32xf32, #tpu.memory_space<vmem>>, vector<8x32xf32>
      tpu.vector_store %arg9[%c0_95, %c0_96], %388 {strides = array<i32>} : memref<8x32xf32, #tpu.memory_space<vmem>>, vector<8x32xf32>,
    } else {
    }
    %c0 = arith.constant 0 : index
    %c0_1 = arith.constant 0 : index
    %3 = vector.load %arg1[%c0, %c0_1] : memref<64x32xbf16, #tpu.memory_space<vmem>>, vector<64x32xbf16>
    %cst = arith.constant 0.000000e+00 : bf16
    %4 = vector.broadcast %cst : bf16 to vector<64x32xbf16>
    %5 = arith.maximumf %3, %4 : vector<64x32xbf16>
    %c0_2 = arith.constant 0 : index
    %c0_3 = arith.constant 0 : index
    %6 = vector.load %arg3[%c0_2, %c0_3] : memref<96x32xbf16, #tpu.memory_space<vmem>>, vector<96x32xbf16>
    %cst_4 = arith.constant dense<0.000000e+00> : vector<64x96xf32>
    %7 = tpu.matmul %5, %6, %cst_4 {dimension_numbers = #tpu.dot_dimension_numbers<[1], [1], [0], [0], [0, 0, 1, 0], [], []>} : vector<64x32xbf16>, vector<96x32xbf16>, vector<64x96xf32> -> vector<64x96xf32>
    %c0_5 = arith.constant 0 : index
    %c0_6 = arith.constant 0 : index
    %8 = vector.load %arg5[%c0_5, %c0_6] : memref<1x96xf32, #tpu.memory_space<vmem>>, vector<1x96xf32>
    %9 = vector.broadcast %8 : vector<1x96xf32> to vector<64x96xf32>
    %10 = arith.addf %7, %9 : vector<64x96xf32>
    %c0_7 = arith.constant 0 : index
    %c0_8 = arith.constant 0 : index
    %11 = vector.load %arg10[%c0_7, %c0_8] : memref<64x96xf32, #tpu.memory_space<vmem>>, vector<64x96xf32>
    tpu.vector_store %arg10[%c0_7, %c0_8], %10 {strides = array<i32>} : memref<64x96xf32, #tpu.memory_space<vmem>>, vector<64x96xf32>,
    %c0_9 = arith.constant 0 : index
    %c0_10 = arith.constant 0 : index
    %12 = vector.load %arg4[%c0_9, %c0_10] : memref<96x32xbf16, #tpu.memory_space<vmem>>, vector<96x32xbf16>
    %c0_11 = arith.constant 0 : index
    %c0_12 = arith.constant 0 : index
    %13 = vector.load %arg6[%c0_11, %c0_12] : memref<1x32xf32, #tpu.memory_space<vmem>>, vector<1x32xf32>
    %14 = vector.shape_cast %13 : vector<1x32xf32> to vector<1x32xf32>
    %15 = vector.broadcast %14 : vector<1x32xf32> to vector<8x32xf32>
    %c8_i32 = arith.constant 8 : i32
    %16 = arith.muli %arg0, %c8_i32 : i32
    %c0_13 = arith.constant 0 : index
    %c0_14 = arith.constant 0 : index
    %17 = vector.load %arg9[%c0_13, %c0_14] : memref<8x32xf32, #tpu.memory_space<vmem>>, vector<8x32xf32>
    %c0_i32_15 = arith.constant 0 : i32
    %c8_i32_16 = arith.constant 8 : i32
    %18 = arith.muli %c0_i32_15, %c8_i32_16 : i32
    %19 = tpu.assume_multiple %18, 8 : i32
    %20 = arith.index_cast %19 : i32 to index
    %c0_17 = arith.constant 0 : index
    %21 = vector.load %arg10[%20, %c0_17] : memref<64x96xf32, #tpu.memory_space<vmem>>, vector<8x96xf32>
    %22 = arith.truncf %17 : vector<8x32xf32> to vector<8x32xbf16>
    %cst_18 = arith.constant dense<0.000000e+00> : vector<8x96xf32>
    %23 = tpu.matmul %22, %12, %cst_18 {dimension_numbers = #tpu.dot_dimension_numbers<[1], [1], [0], [0], [0, 0, 1, 0], [], []>} : vector<8x32xbf16>, vector<96x32xbf16>, vector<8x96xf32> -> vector<8x96xf32>
    %24 = vector.extract_strided_slice %21 {offsets = [0, 0], sizes = [8, 32], strides = [1, 1]} : vector<8x96xf32> to vector<8x32xf32>
    %25 = vector.extract_strided_slice %23 {offsets = [0, 0], sizes = [8, 32], strides = [1, 1]} : vector<8x96xf32> to vector<8x32xf32>
    %26 = arith.addf %24, %25 : vector<8x32xf32>
    %27 = arith.negf %26 : vector<8x32xf32>
    %28 = math.exp %27 : vector<8x32xf32>
    %cst_19 = arith.constant 1.000000e+00 : f32
    %29 = vector.broadcast %cst_19 : f32 to vector<8x32xf32>
    %30 = arith.addf %29, %28 : vector<8x32xf32>
    %31 = arith.divf %29, %30 : vector<8x32xf32>
    %32 = vector.extract_strided_slice %21 {offsets = [0, 32], sizes = [8, 32], strides = [1, 1]} : vector<8x96xf32> to vector<8x32xf32>
    %33 = vector.extract_strided_slice %23 {offsets = [0, 32], sizes = [8, 32], strides = [1, 1]} : vector<8x96xf32> to vector<8x32xf32>
    %34 = arith.addf %32, %33 : vector<8x32xf32>
    %35 = arith.negf %34 : vector<8x32xf32>
    %36 = math.exp %35 : vector<8x32xf32>
    %cst_20 = arith.constant 1.000000e+00 : f32
    %37 = vector.broadcast %cst_20 : f32 to vector<8x32xf32>
    %38 = arith.addf %37, %36 : vector<8x32xf32>
    %39 = arith.divf %37, %38 : vector<8x32xf32>
    %40 = vector.extract_strided_slice %21 {offsets = [0, 64], sizes = [8, 32], strides = [1, 1]} : vector<8x96xf32> to vector<8x32xf32>
    %41 = vector.extract_strided_slice %23 {offsets = [0, 64], sizes = [8, 32], strides = [1, 1]} : vector<8x96xf32> to vector<8x32xf32>
    %42 = arith.addf %41, %15 : vector<8x32xf32>
    %43 = arith.mulf %31, %42 : vector<8x32xf32>
    %44 = arith.addf %40, %43 : vector<8x32xf32>
    %45 = math.tanh %44 : vector<8x32xf32>
    %cst_21 = arith.constant 1.000000e+00 : f32
    %46 = vector.broadcast %cst_21 : f32 to vector<8x32xf32>
    %47 = arith.subf %46, %39 : vector<8x32xf32>
    %48 = arith.mulf %47, %45 : vector<8x32xf32>
    %49 = arith.mulf %39, %17 : vector<8x32xf32>
    %50 = arith.addf %48, %49 : vector<8x32xf32>
    %51 = arith.addi %16, %c0_i32_15 : i32
    %c8_i32_22 = arith.constant 8 : i32
    %52 = arith.cmpi slt, %51, %c8_i32_22 : i32
    %53 = arith.extui %52 : i1 to i32
    %54 = arith.sitofp %53 : i32 to f32
    %55 = vector.broadcast %54 : f32 to vector<8x32xf32>
    %56 = arith.mulf %55, %50 : vector<8x32xf32>
    %cst_23 = arith.constant 1.000000e+00 : f32
    %57 = arith.subf %cst_23, %54 : f32
    %58 = vector.broadcast %57 : f32 to vector<8x32xf32>
    %59 = arith.mulf %58, %17 : vector<8x32xf32>
    %60 = arith.addf %56, %59 : vector<8x32xf32>
    %61 = arith.truncf %60 : vector<8x32xf32> to vector<8x32xbf16>
    %62 = arith.index_cast %19 : i32 to index
    %c0_24 = arith.constant 0 : index
    %63 = vector.load %arg7[%62, %c0_24] : memref<64x32xbf16, #tpu.memory_space<vmem>>, vector<8x32xbf16>
    tpu.vector_store %arg7[%62, %c0_24], %61 {strides = array<i32>} : memref<64x32xbf16, #tpu.memory_space<vmem>>, vector<8x32xbf16>,
    %c1_i32 = arith.constant 1 : i32
    %c8_i32_25 = arith.constant 8 : i32
    %64 = arith.muli %c1_i32, %c8_i32_25 : i32
    %65 = tpu.assume_multiple %64, 8 : i32
    %66 = arith.index_cast %65 : i32 to index
    %c0_26 = arith.constant 0 : index
    %67 = vector.load %arg10[%66, %c0_26] : memref<64x96xf32, #tpu.memory_space<vmem>>, vector<8x96xf32>
    %68 = arith.truncf %60 : vector<8x32xf32> to vector<8x32xbf16>
    %cst_27 = arith.constant dense<0.000000e+00> : vector<8x96xf32>
    %69 = tpu.matmul %68, %12, %cst_27 {dimension_numbers = #tpu.dot_dimension_numbers<[1], [1], [0], [0], [0, 0, 1, 0], [], []>} : vector<8x32xbf16>, vector<96x32xbf16>, vector<8x96xf32> -> vector<8x96xf32>
    %70 = vector.extract_strided_slice %67 {offsets = [0, 0], sizes = [8, 32], strides = [1, 1]} : vector<8x96xf32> to vector<8x32xf32>
    %71 = vector.extract_strided_slice %69 {offsets = [0, 0], sizes = [8, 32], strides = [1, 1]} : vector<8x96xf32> to vector<8x32xf32>
    %72 = arith.addf %70, %71 : vector<8x32xf32>
    %73 = arith.negf %72 : vector<8x32xf32>
    %74 = math.exp %73 : vector<8x32xf32>
    %cst_28 = arith.constant 1.000000e+00 : f32
    %75 = vector.broadcast %cst_28 : f32 to vector<8x32xf32>
    %76 = arith.addf %75, %74 : vector<8x32xf32>
    %77 = arith.divf %75, %76 : vector<8x32xf32>
    %78 = vector.extract_strided_slice %67 {offsets = [0, 32], sizes = [8, 32], strides = [1, 1]} : vector<8x96xf32> to vector<8x32xf32>
    %79 = vector.extract_strided_slice %69 {offsets = [0, 32], sizes = [8, 32], strides = [1, 1]} : vector<8x96xf32> to vector<8x32xf32>
    %80 = arith.addf %78, %79 : vector<8x32xf32>
    %81 = arith.negf %80 : vector<8x32xf32>
    %82 = math.exp %81 : vector<8x32xf32>
    %cst_29 = arith.constant 1.000000e+00 : f32
    %83 = vector.broadcast %cst_29 : f32 to vector<8x32xf32>
    %84 = arith.addf %83, %82 : vector<8x32xf32>
    %85 = arith.divf %83, %84 : vector<8x32xf32>
    %86 = vector.extract_strided_slice %67 {offsets = [0, 64], sizes = [8, 32], strides = [1, 1]} : vector<8x96xf32> to vector<8x32xf32>
    %87 = vector.extract_strided_slice %69 {offsets = [0, 64], sizes = [8, 32], strides = [1, 1]} : vector<8x96xf32> to vector<8x32xf32>
    %88 = arith.addf %87, %15 : vector<8x32xf32>
    %89 = arith.mulf %77, %88 : vector<8x32xf32>
    %90 = arith.addf %86, %89 : vector<8x32xf32>
    %91 = math.tanh %90 : vector<8x32xf32>
    %cst_30 = arith.constant 1.000000e+00 : f32
    %92 = vector.broadcast %cst_30 : f32 to vector<8x32xf32>
    %93 = arith.subf %92, %85 : vector<8x32xf32>
    %94 = arith.mulf %93, %91 : vector<8x32xf32>
    %95 = arith.mulf %85, %60 : vector<8x32xf32>
    %96 = arith.addf %94, %95 : vector<8x32xf32>
    %97 = arith.addi %16, %c1_i32 : i32
    %c8_i32_31 = arith.constant 8 : i32
    %98 = arith.cmpi slt, %97, %c8_i32_31 : i32
    %99 = arith.extui %98 : i1 to i32
    %100 = arith.sitofp %99 : i32 to f32
    %101 = vector.broadcast %100 : f32 to vector<8x32xf32>
    %102 = arith.mulf %101, %96 : vector<8x32xf32>
    %cst_32 = arith.constant 1.000000e+00 : f32
    %103 = arith.subf %cst_32, %100 : f32
    %104 = vector.broadcast %103 : f32 to vector<8x32xf32>
    %105 = arith.mulf %104, %60 : vector<8x32xf32>
    %106 = arith.addf %102, %105 : vector<8x32xf32>
    %107 = arith.truncf %106 : vector<8x32xf32> to vector<8x32xbf16>
    %108 = arith.index_cast %65 : i32 to index
    %c0_33 = arith.constant 0 : index
    %109 = vector.load %arg7[%108, %c0_33] : memref<64x32xbf16, #tpu.memory_space<vmem>>, vector<8x32xbf16>
    tpu.vector_store %arg7[%108, %c0_33], %107 {strides = array<i32>} : memref<64x32xbf16, #tpu.memory_space<vmem>>, vector<8x32xbf16>,
    %c2_i32 = arith.constant 2 : i32
    %c8_i32_34 = arith.constant 8 : i32
    %110 = arith.muli %c2_i32, %c8_i32_34 : i32
    %111 = tpu.assume_multiple %110, 8 : i32
    %112 = arith.index_cast %111 : i32 to index
    %c0_35 = arith.constant 0 : index
    %113 = vector.load %arg10[%112, %c0_35] : memref<64x96xf32, #tpu.memory_space<vmem>>, vector<8x96xf32>
    %114 = arith.truncf %106 : vector<8x32xf32> to vector<8x32xbf16>
    %cst_36 = arith.constant dense<0.000000e+00> : vector<8x96xf32>
    %115 = tpu.matmul %114, %12, %cst_36 {dimension_numbers = #tpu.dot_dimension_numbers<[1], [1], [0], [0], [0, 0, 1, 0], [], []>} : vector<8x32xbf16>, vector<96x32xbf16>, vector<8x96xf32> -> vector<8x96xf32>
    %116 = vector.extract_strided_slice %113 {offsets = [0, 0], sizes = [8, 32], strides = [1, 1]} : vector<8x96xf32> to vector<8x32xf32>
    %117 = vector.extract_strided_slice %115 {offsets = [0, 0], sizes = [8, 32], strides = [1, 1]} : vector<8x96xf32> to vector<8x32xf32>
    %118 = arith.addf %116, %117 : vector<8x32xf32>
    %119 = arith.negf %118 : vector<8x32xf32>
    %120 = math.exp %119 : vector<8x32xf32>
    %cst_37 = arith.constant 1.000000e+00 : f32
    %121 = vector.broadcast %cst_37 : f32 to vector<8x32xf32>
    %122 = arith.addf %121, %120 : vector<8x32xf32>
    %123 = arith.divf %121, %122 : vector<8x32xf32>
    %124 = vector.extract_strided_slice %113 {offsets = [0, 32], sizes = [8, 32], strides = [1, 1]} : vector<8x96xf32> to vector<8x32xf32>
    %125 = vector.extract_strided_slice %115 {offsets = [0, 32], sizes = [8, 32], strides = [1, 1]} : vector<8x96xf32> to vector<8x32xf32>
    %126 = arith.addf %124, %125 : vector<8x32xf32>
    %127 = arith.negf %126 : vector<8x32xf32>
    %128 = math.exp %127 : vector<8x32xf32>
    %cst_38 = arith.constant 1.000000e+00 : f32
    %129 = vector.broadcast %cst_38 : f32 to vector<8x32xf32>
    %130 = arith.addf %129, %128 : vector<8x32xf32>
    %131 = arith.divf %129, %130 : vector<8x32xf32>
    %132 = vector.extract_strided_slice %113 {offsets = [0, 64], sizes = [8, 32], strides = [1, 1]} : vector<8x96xf32> to vector<8x32xf32>
    %133 = vector.extract_strided_slice %115 {offsets = [0, 64], sizes = [8, 32], strides = [1, 1]} : vector<8x96xf32> to vector<8x32xf32>
    %134 = arith.addf %133, %15 : vector<8x32xf32>
    %135 = arith.mulf %123, %134 : vector<8x32xf32>
    %136 = arith.addf %132, %135 : vector<8x32xf32>
    %137 = math.tanh %136 : vector<8x32xf32>
    %cst_39 = arith.constant 1.000000e+00 : f32
    %138 = vector.broadcast %cst_39 : f32 to vector<8x32xf32>
    %139 = arith.subf %138, %131 : vector<8x32xf32>
    %140 = arith.mulf %139, %137 : vector<8x32xf32>
    %141 = arith.mulf %131, %106 : vector<8x32xf32>
    %142 = arith.addf %140, %141 : vector<8x32xf32>
    %143 = arith.addi %16, %c2_i32 : i32
    %c8_i32_40 = arith.constant 8 : i32
    %144 = arith.cmpi slt, %143, %c8_i32_40 : i32
    %145 = arith.extui %144 : i1 to i32
    %146 = arith.sitofp %145 : i32 to f32
    %147 = vector.broadcast %146 : f32 to vector<8x32xf32>
    %148 = arith.mulf %147, %142 : vector<8x32xf32>
    %cst_41 = arith.constant 1.000000e+00 : f32
    %149 = arith.subf %cst_41, %146 : f32
    %150 = vector.broadcast %149 : f32 to vector<8x32xf32>
    %151 = arith.mulf %150, %106 : vector<8x32xf32>
    %152 = arith.addf %148, %151 : vector<8x32xf32>
    %153 = arith.truncf %152 : vector<8x32xf32> to vector<8x32xbf16>
    %154 = arith.index_cast %111 : i32 to index
    %c0_42 = arith.constant 0 : index
    %155 = vector.load %arg7[%154, %c0_42] : memref<64x32xbf16, #tpu.memory_space<vmem>>, vector<8x32xbf16>
    tpu.vector_store %arg7[%154, %c0_42], %153 {strides = array<i32>} : memref<64x32xbf16, #tpu.memory_space<vmem>>, vector<8x32xbf16>,
    %c3_i32 = arith.constant 3 : i32
    %c8_i32_43 = arith.constant 8 : i32
    %156 = arith.muli %c3_i32, %c8_i32_43 : i32
    %157 = tpu.assume_multiple %156, 8 : i32
    %158 = arith.index_cast %157 : i32 to index
    %c0_44 = arith.constant 0 : index
    %159 = vector.load %arg10[%158, %c0_44] : memref<64x96xf32, #tpu.memory_space<vmem>>, vector<8x96xf32>
    %160 = arith.truncf %152 : vector<8x32xf32> to vector<8x32xbf16>
    %cst_45 = arith.constant dense<0.000000e+00> : vector<8x96xf32>
    %161 = tpu.matmul %160, %12, %cst_45 {dimension_numbers = #tpu.dot_dimension_numbers<[1], [1], [0], [0], [0, 0, 1, 0], [], []>} : vector<8x32xbf16>, vector<96x32xbf16>, vector<8x96xf32> -> vector<8x96xf32>
    %162 = vector.extract_strided_slice %159 {offsets = [0, 0], sizes = [8, 32], strides = [1, 1]} : vector<8x96xf32> to vector<8x32xf32>
    %163 = vector.extract_strided_slice %161 {offsets = [0, 0], sizes = [8, 32], strides = [1, 1]} : vector<8x96xf32> to vector<8x32xf32>
    %164 = arith.addf %162, %163 : vector<8x32xf32>
    %165 = arith.negf %164 : vector<8x32xf32>
    %166 = math.exp %165 : vector<8x32xf32>
    %cst_46 = arith.constant 1.000000e+00 : f32
    %167 = vector.broadcast %cst_46 : f32 to vector<8x32xf32>
    %168 = arith.addf %167, %166 : vector<8x32xf32>
    %169 = arith.divf %167, %168 : vector<8x32xf32>
    %170 = vector.extract_strided_slice %159 {offsets = [0, 32], sizes = [8, 32], strides = [1, 1]} : vector<8x96xf32> to vector<8x32xf32>
    %171 = vector.extract_strided_slice %161 {offsets = [0, 32], sizes = [8, 32], strides = [1, 1]} : vector<8x96xf32> to vector<8x32xf32>
    %172 = arith.addf %170, %171 : vector<8x32xf32>
    %173 = arith.negf %172 : vector<8x32xf32>
    %174 = math.exp %173 : vector<8x32xf32>
    %cst_47 = arith.constant 1.000000e+00 : f32
    %175 = vector.broadcast %cst_47 : f32 to vector<8x32xf32>
    %176 = arith.addf %175, %174 : vector<8x32xf32>
    %177 = arith.divf %175, %176 : vector<8x32xf32>
    %178 = vector.extract_strided_slice %159 {offsets = [0, 64], sizes = [8, 32], strides = [1, 1]} : vector<8x96xf32> to vector<8x32xf32>
    %179 = vector.extract_strided_slice %161 {offsets = [0, 64], sizes = [8, 32], strides = [1, 1]} : vector<8x96xf32> to vector<8x32xf32>
    %180 = arith.addf %179, %15 : vector<8x32xf32>
    %181 = arith.mulf %169, %180 : vector<8x32xf32>
    %182 = arith.addf %178, %181 : vector<8x32xf32>
    %183 = math.tanh %182 : vector<8x32xf32>
    %cst_48 = arith.constant 1.000000e+00 : f32
    %184 = vector.broadcast %cst_48 : f32 to vector<8x32xf32>
    %185 = arith.subf %184, %177 : vector<8x32xf32>
    %186 = arith.mulf %185, %183 : vector<8x32xf32>
    %187 = arith.mulf %177, %152 : vector<8x32xf32>
    %188 = arith.addf %186, %187 : vector<8x32xf32>
    %189 = arith.addi %16, %c3_i32 : i32
    %c8_i32_49 = arith.constant 8 : i32
    %190 = arith.cmpi slt, %189, %c8_i32_49 : i32
    %191 = arith.extui %190 : i1 to i32
    %192 = arith.sitofp %191 : i32 to f32
    %193 = vector.broadcast %192 : f32 to vector<8x32xf32>
    %194 = arith.mulf %193, %188 : vector<8x32xf32>
    %cst_50 = arith.constant 1.000000e+00 : f32
    %195 = arith.subf %cst_50, %192 : f32
    %196 = vector.broadcast %195 : f32 to vector<8x32xf32>
    %197 = arith.mulf %196, %152 : vector<8x32xf32>
    %198 = arith.addf %194, %197 : vector<8x32xf32>
    %199 = arith.truncf %198 : vector<8x32xf32> to vector<8x32xbf16>
    %200 = arith.index_cast %157 : i32 to index
    %c0_51 = arith.constant 0 : index
    %201 = vector.load %arg7[%200, %c0_51] : memref<64x32xbf16, #tpu.memory_space<vmem>>, vector<8x32xbf16>
    tpu.vector_store %arg7[%200, %c0_51], %199 {strides = array<i32>} : memref<64x32xbf16, #tpu.memory_space<vmem>>, vector<8x32xbf16>,
    %c4_i32 = arith.constant 4 : i32
    %c8_i32_52 = arith.constant 8 : i32
    %202 = arith.muli %c4_i32, %c8_i32_52 : i32
    %203 = tpu.assume_multiple %202, 8 : i32
    %204 = arith.index_cast %203 : i32 to index
    %c0_53 = arith.constant 0 : index
    %205 = vector.load %arg10[%204, %c0_53] : memref<64x96xf32, #tpu.memory_space<vmem>>, vector<8x96xf32>
    %206 = arith.truncf %198 : vector<8x32xf32> to vector<8x32xbf16>
    %cst_54 = arith.constant dense<0.000000e+00> : vector<8x96xf32>
    %207 = tpu.matmul %206, %12, %cst_54 {dimension_numbers = #tpu.dot_dimension_numbers<[1], [1], [0], [0], [0, 0, 1, 0], [], []>} : vector<8x32xbf16>, vector<96x32xbf16>, vector<8x96xf32> -> vector<8x96xf32>
    %208 = vector.extract_strided_slice %205 {offsets = [0, 0], sizes = [8, 32], strides = [1, 1]} : vector<8x96xf32> to vector<8x32xf32>
    %209 = vector.extract_strided_slice %207 {offsets = [0, 0], sizes = [8, 32], strides = [1, 1]} : vector<8x96xf32> to vector<8x32xf32>
    %210 = arith.addf %208, %209 : vector<8x32xf32>
    %211 = arith.negf %210 : vector<8x32xf32>
    %212 = math.exp %211 : vector<8x32xf32>
    %cst_55 = arith.constant 1.000000e+00 : f32
    %213 = vector.broadcast %cst_55 : f32 to vector<8x32xf32>
    %214 = arith.addf %213, %212 : vector<8x32xf32>
    %215 = arith.divf %213, %214 : vector<8x32xf32>
    %216 = vector.extract_strided_slice %205 {offsets = [0, 32], sizes = [8, 32], strides = [1, 1]} : vector<8x96xf32> to vector<8x32xf32>
    %217 = vector.extract_strided_slice %207 {offsets = [0, 32], sizes = [8, 32], strides = [1, 1]} : vector<8x96xf32> to vector<8x32xf32>
    %218 = arith.addf %216, %217 : vector<8x32xf32>
    %219 = arith.negf %218 : vector<8x32xf32>
    %220 = math.exp %219 : vector<8x32xf32>
    %cst_56 = arith.constant 1.000000e+00 : f32
    %221 = vector.broadcast %cst_56 : f32 to vector<8x32xf32>
    %222 = arith.addf %221, %220 : vector<8x32xf32>
    %223 = arith.divf %221, %222 : vector<8x32xf32>
    %224 = vector.extract_strided_slice %205 {offsets = [0, 64], sizes = [8, 32], strides = [1, 1]} : vector<8x96xf32> to vector<8x32xf32>
    %225 = vector.extract_strided_slice %207 {offsets = [0, 64], sizes = [8, 32], strides = [1, 1]} : vector<8x96xf32> to vector<8x32xf32>
    %226 = arith.addf %225, %15 : vector<8x32xf32>
    %227 = arith.mulf %215, %226 : vector<8x32xf32>
    %228 = arith.addf %224, %227 : vector<8x32xf32>
    %229 = math.tanh %228 : vector<8x32xf32>
    %cst_57 = arith.constant 1.000000e+00 : f32
    %230 = vector.broadcast %cst_57 : f32 to vector<8x32xf32>
    %231 = arith.subf %230, %223 : vector<8x32xf32>
    %232 = arith.mulf %231, %229 : vector<8x32xf32>
    %233 = arith.mulf %223, %198 : vector<8x32xf32>
    %234 = arith.addf %232, %233 : vector<8x32xf32>
    %235 = arith.addi %16, %c4_i32 : i32
    %c8_i32_58 = arith.constant 8 : i32
    %236 = arith.cmpi slt, %235, %c8_i32_58 : i32
    %237 = arith.extui %236 : i1 to i32
    %238 = arith.sitofp %237 : i32 to f32
    %239 = vector.broadcast %238 : f32 to vector<8x32xf32>
    %240 = arith.mulf %239, %234 : vector<8x32xf32>
    %cst_59 = arith.constant 1.000000e+00 : f32
    %241 = arith.subf %cst_59, %238 : f32
    %242 = vector.broadcast %241 : f32 to vector<8x32xf32>
    %243 = arith.mulf %242, %198 : vector<8x32xf32>
    %244 = arith.addf %240, %243 : vector<8x32xf32>
    %245 = arith.truncf %244 : vector<8x32xf32> to vector<8x32xbf16>
    %246 = arith.index_cast %203 : i32 to index
    %c0_60 = arith.constant 0 : index
    %247 = vector.load %arg7[%246, %c0_60] : memref<64x32xbf16, #tpu.memory_space<vmem>>, vector<8x32xbf16>
    tpu.vector_store %arg7[%246, %c0_60], %245 {strides = array<i32>} : memref<64x32xbf16, #tpu.memory_space<vmem>>, vector<8x32xbf16>,
    %c5_i32 = arith.constant 5 : i32
    %c8_i32_61 = arith.constant 8 : i32
    %248 = arith.muli %c5_i32, %c8_i32_61 : i32
    %249 = tpu.assume_multiple %248, 8 : i32
    %250 = arith.index_cast %249 : i32 to index
    %c0_62 = arith.constant 0 : index
    %251 = vector.load %arg10[%250, %c0_62] : memref<64x96xf32, #tpu.memory_space<vmem>>, vector<8x96xf32>
    %252 = arith.truncf %244 : vector<8x32xf32> to vector<8x32xbf16>
    %cst_63 = arith.constant dense<0.000000e+00> : vector<8x96xf32>
    %253 = tpu.matmul %252, %12, %cst_63 {dimension_numbers = #tpu.dot_dimension_numbers<[1], [1], [0], [0], [0, 0, 1, 0], [], []>} : vector<8x32xbf16>, vector<96x32xbf16>, vector<8x96xf32> -> vector<8x96xf32>
    %254 = vector.extract_strided_slice %251 {offsets = [0, 0], sizes = [8, 32], strides = [1, 1]} : vector<8x96xf32> to vector<8x32xf32>
    %255 = vector.extract_strided_slice %253 {offsets = [0, 0], sizes = [8, 32], strides = [1, 1]} : vector<8x96xf32> to vector<8x32xf32>
    %256 = arith.addf %254, %255 : vector<8x32xf32>
    %257 = arith.negf %256 : vector<8x32xf32>
    %258 = math.exp %257 : vector<8x32xf32>
    %cst_64 = arith.constant 1.000000e+00 : f32
    %259 = vector.broadcast %cst_64 : f32 to vector<8x32xf32>
    %260 = arith.addf %259, %258 : vector<8x32xf32>
    %261 = arith.divf %259, %260 : vector<8x32xf32>
    %262 = vector.extract_strided_slice %251 {offsets = [0, 32], sizes = [8, 32], strides = [1, 1]} : vector<8x96xf32> to vector<8x32xf32>
    %263 = vector.extract_strided_slice %253 {offsets = [0, 32], sizes = [8, 32], strides = [1, 1]} : vector<8x96xf32> to vector<8x32xf32>
    %264 = arith.addf %262, %263 : vector<8x32xf32>
    %265 = arith.negf %264 : vector<8x32xf32>
    %266 = math.exp %265 : vector<8x32xf32>
    %cst_65 = arith.constant 1.000000e+00 : f32
    %267 = vector.broadcast %cst_65 : f32 to vector<8x32xf32>
    %268 = arith.addf %267, %266 : vector<8x32xf32>
    %269 = arith.divf %267, %268 : vector<8x32xf32>
    %270 = vector.extract_strided_slice %251 {offsets = [0, 64], sizes = [8, 32], strides = [1, 1]} : vector<8x96xf32> to vector<8x32xf32>
    %271 = vector.extract_strided_slice %253 {offsets = [0, 64], sizes = [8, 32], strides = [1, 1]} : vector<8x96xf32> to vector<8x32xf32>
    %272 = arith.addf %271, %15 : vector<8x32xf32>
    %273 = arith.mulf %261, %272 : vector<8x32xf32>
    %274 = arith.addf %270, %273 : vector<8x32xf32>
    %275 = math.tanh %274 : vector<8x32xf32>
    %cst_66 = arith.constant 1.000000e+00 : f32
    %276 = vector.broadcast %cst_66 : f32 to vector<8x32xf32>
    %277 = arith.subf %276, %269 : vector<8x32xf32>
    %278 = arith.mulf %277, %275 : vector<8x32xf32>
    %279 = arith.mulf %269, %244 : vector<8x32xf32>
    %280 = arith.addf %278, %279 : vector<8x32xf32>
    %281 = arith.addi %16, %c5_i32 : i32
    %c8_i32_67 = arith.constant 8 : i32
    %282 = arith.cmpi slt, %281, %c8_i32_67 : i32
    %283 = arith.extui %282 : i1 to i32
    %284 = arith.sitofp %283 : i32 to f32
    %285 = vector.broadcast %284 : f32 to vector<8x32xf32>
    %286 = arith.mulf %285, %280 : vector<8x32xf32>
    %cst_68 = arith.constant 1.000000e+00 : f32
    %287 = arith.subf %cst_68, %284 : f32
    %288 = vector.broadcast %287 : f32 to vector<8x32xf32>
    %289 = arith.mulf %288, %244 : vector<8x32xf32>
    %290 = arith.addf %286, %289 : vector<8x32xf32>
    %291 = arith.truncf %290 : vector<8x32xf32> to vector<8x32xbf16>
    %292 = arith.index_cast %249 : i32 to index
    %c0_69 = arith.constant 0 : index
    %293 = vector.load %arg7[%292, %c0_69] : memref<64x32xbf16, #tpu.memory_space<vmem>>, vector<8x32xbf16>
    tpu.vector_store %arg7[%292, %c0_69], %291 {strides = array<i32>} : memref<64x32xbf16, #tpu.memory_space<vmem>>, vector<8x32xbf16>,
    %c6_i32 = arith.constant 6 : i32
    %c8_i32_70 = arith.constant 8 : i32
    %294 = arith.muli %c6_i32, %c8_i32_70 : i32
    %295 = tpu.assume_multiple %294, 8 : i32
    %296 = arith.index_cast %295 : i32 to index
    %c0_71 = arith.constant 0 : index
    %297 = vector.load %arg10[%296, %c0_71] : memref<64x96xf32, #tpu.memory_space<vmem>>, vector<8x96xf32>
    %298 = arith.truncf %290 : vector<8x32xf32> to vector<8x32xbf16>
    %cst_72 = arith.constant dense<0.000000e+00> : vector<8x96xf32>
    %299 = tpu.matmul %298, %12, %cst_72 {dimension_numbers = #tpu.dot_dimension_numbers<[1], [1], [0], [0], [0, 0, 1, 0], [], []>} : vector<8x32xbf16>, vector<96x32xbf16>, vector<8x96xf32> -> vector<8x96xf32>
    %300 = vector.extract_strided_slice %297 {offsets = [0, 0], sizes = [8, 32], strides = [1, 1]} : vector<8x96xf32> to vector<8x32xf32>
    %301 = vector.extract_strided_slice %299 {offsets = [0, 0], sizes = [8, 32], strides = [1, 1]} : vector<8x96xf32> to vector<8x32xf32>
    %302 = arith.addf %300, %301 : vector<8x32xf32>
    %303 = arith.negf %302 : vector<8x32xf32>
    %304 = math.exp %303 : vector<8x32xf32>
    %cst_73 = arith.constant 1.000000e+00 : f32
    %305 = vector.broadcast %cst_73 : f32 to vector<8x32xf32>
    %306 = arith.addf %305, %304 : vector<8x32xf32>
    %307 = arith.divf %305, %306 : vector<8x32xf32>
    %308 = vector.extract_strided_slice %297 {offsets = [0, 32], sizes = [8, 32], strides = [1, 1]} : vector<8x96xf32> to vector<8x32xf32>
    %309 = vector.extract_strided_slice %299 {offsets = [0, 32], sizes = [8, 32], strides = [1, 1]} : vector<8x96xf32> to vector<8x32xf32>
    %310 = arith.addf %308, %309 : vector<8x32xf32>
    %311 = arith.negf %310 : vector<8x32xf32>
    %312 = math.exp %311 : vector<8x32xf32>
    %cst_74 = arith.constant 1.000000e+00 : f32
    %313 = vector.broadcast %cst_74 : f32 to vector<8x32xf32>
    %314 = arith.addf %313, %312 : vector<8x32xf32>
    %315 = arith.divf %313, %314 : vector<8x32xf32>
    %316 = vector.extract_strided_slice %297 {offsets = [0, 64], sizes = [8, 32], strides = [1, 1]} : vector<8x96xf32> to vector<8x32xf32>
    %317 = vector.extract_strided_slice %299 {offsets = [0, 64], sizes = [8, 32], strides = [1, 1]} : vector<8x96xf32> to vector<8x32xf32>
    %318 = arith.addf %317, %15 : vector<8x32xf32>
    %319 = arith.mulf %307, %318 : vector<8x32xf32>
    %320 = arith.addf %316, %319 : vector<8x32xf32>
    %321 = math.tanh %320 : vector<8x32xf32>
    %cst_75 = arith.constant 1.000000e+00 : f32
    %322 = vector.broadcast %cst_75 : f32 to vector<8x32xf32>
    %323 = arith.subf %322, %315 : vector<8x32xf32>
    %324 = arith.mulf %323, %321 : vector<8x32xf32>
    %325 = arith.mulf %315, %290 : vector<8x32xf32>
    %326 = arith.addf %324, %325 : vector<8x32xf32>
    %327 = arith.addi %16, %c6_i32 : i32
    %c8_i32_76 = arith.constant 8 : i32
    %328 = arith.cmpi slt, %327, %c8_i32_76 : i32
    %329 = arith.extui %328 : i1 to i32
    %330 = arith.sitofp %329 : i32 to f32
    %331 = vector.broadcast %330 : f32 to vector<8x32xf32>
    %332 = arith.mulf %331, %326 : vector<8x32xf32>
    %cst_77 = arith.constant 1.000000e+00 : f32
    %333 = arith.subf %cst_77, %330 : f32
    %334 = vector.broadcast %333 : f32 to vector<8x32xf32>
    %335 = arith.mulf %334, %290 : vector<8x32xf32>
    %336 = arith.addf %332, %335 : vector<8x32xf32>
    %337 = arith.truncf %336 : vector<8x32xf32> to vector<8x32xbf16>
    %338 = arith.index_cast %295 : i32 to index
    %c0_78 = arith.constant 0 : index
    %339 = vector.load %arg7[%338, %c0_78] : memref<64x32xbf16, #tpu.memory_space<vmem>>, vector<8x32xbf16>
    tpu.vector_store %arg7[%338, %c0_78], %337 {strides = array<i32>} : memref<64x32xbf16, #tpu.memory_space<vmem>>, vector<8x32xbf16>,
    %c7_i32 = arith.constant 7 : i32
    %c8_i32_79 = arith.constant 8 : i32
    %340 = arith.muli %c7_i32, %c8_i32_79 : i32
    %341 = tpu.assume_multiple %340, 8 : i32
    %342 = arith.index_cast %341 : i32 to index
    %c0_80 = arith.constant 0 : index
    %343 = vector.load %arg10[%342, %c0_80] : memref<64x96xf32, #tpu.memory_space<vmem>>, vector<8x96xf32>
    %344 = arith.truncf %336 : vector<8x32xf32> to vector<8x32xbf16>
    %cst_81 = arith.constant dense<0.000000e+00> : vector<8x96xf32>
    %345 = tpu.matmul %344, %12, %cst_81 {dimension_numbers = #tpu.dot_dimension_numbers<[1], [1], [0], [0], [0, 0, 1, 0], [], []>} : vector<8x32xbf16>, vector<96x32xbf16>, vector<8x96xf32> -> vector<8x96xf32>
    %346 = vector.extract_strided_slice %343 {offsets = [0, 0], sizes = [8, 32], strides = [1, 1]} : vector<8x96xf32> to vector<8x32xf32>
    %347 = vector.extract_strided_slice %345 {offsets = [0, 0], sizes = [8, 32], strides = [1, 1]} : vector<8x96xf32> to vector<8x32xf32>
    %348 = arith.addf %346, %347 : vector<8x32xf32>
    %349 = arith.negf %348 : vector<8x32xf32>
    %350 = math.exp %349 : vector<8x32xf32>
    %cst_82 = arith.constant 1.000000e+00 : f32
    %351 = vector.broadcast %cst_82 : f32 to vector<8x32xf32>
    %352 = arith.addf %351, %350 : vector<8x32xf32>
    %353 = arith.divf %351, %352 : vector<8x32xf32>
    %354 = vector.extract_strided_slice %343 {offsets = [0, 32], sizes = [8, 32], strides = [1, 1]} : vector<8x96xf32> to vector<8x32xf32>
    %355 = vector.extract_strided_slice %345 {offsets = [0, 32], sizes = [8, 32], strides = [1, 1]} : vector<8x96xf32> to vector<8x32xf32>
    %356 = arith.addf %354, %355 : vector<8x32xf32>
    %357 = arith.negf %356 : vector<8x32xf32>
    %358 = math.exp %357 : vector<8x32xf32>
    %cst_83 = arith.constant 1.000000e+00 : f32
    %359 = vector.broadcast %cst_83 : f32 to vector<8x32xf32>
    %360 = arith.addf %359, %358 : vector<8x32xf32>
    %361 = arith.divf %359, %360 : vector<8x32xf32>
    %362 = vector.extract_strided_slice %343 {offsets = [0, 64], sizes = [8, 32], strides = [1, 1]} : vector<8x96xf32> to vector<8x32xf32>
    %363 = vector.extract_strided_slice %345 {offsets = [0, 64], sizes = [8, 32], strides = [1, 1]} : vector<8x96xf32> to vector<8x32xf32>
    %364 = arith.addf %363, %15 : vector<8x32xf32>
    %365 = arith.mulf %353, %364 : vector<8x32xf32>
    %366 = arith.addf %362, %365 : vector<8x32xf32>
    %367 = math.tanh %366 : vector<8x32xf32>
    %cst_84 = arith.constant 1.000000e+00 : f32
    %368 = vector.broadcast %cst_84 : f32 to vector<8x32xf32>
    %369 = arith.subf %368, %361 : vector<8x32xf32>
    %370 = arith.mulf %369, %367 : vector<8x32xf32>
    %371 = arith.mulf %361, %336 : vector<8x32xf32>
    %372 = arith.addf %370, %371 : vector<8x32xf32>
    %373 = arith.addi %16, %c7_i32 : i32
    %c8_i32_85 = arith.constant 8 : i32
    %374 = arith.cmpi slt, %373, %c8_i32_85 : i32
    %375 = arith.extui %374 : i1 to i32
    %376 = arith.sitofp %375 : i32 to f32
    %377 = vector.broadcast %376 : f32 to vector<8x32xf32>
    %378 = arith.mulf %377, %372 : vector<8x32xf32>
    %cst_86 = arith.constant 1.000000e+00 : f32
    %379 = arith.subf %cst_86, %376 : f32
    %380 = vector.broadcast %379 : f32 to vector<8x32xf32>
    %381 = arith.mulf %380, %336 : vector<8x32xf32>
    %382 = arith.addf %378, %381 : vector<8x32xf32>
    %383 = arith.truncf %382 : vector<8x32xf32> to vector<8x32xbf16>
    %384 = arith.index_cast %341 : i32 to index
    %c0_87 = arith.constant 0 : index
    %385 = vector.load %arg7[%384, %c0_87] : memref<64x32xbf16, #tpu.memory_space<vmem>>, vector<8x32xbf16>
    tpu.vector_store %arg7[%384, %c0_87], %383 {strides = array<i32>} : memref<64x32xbf16, #tpu.memory_space<vmem>>, vector<8x32xbf16>,
    %c8_i32_88 = arith.constant 8 : i32
    %c0_89 = arith.constant 0 : index
    %c0_90 = arith.constant 0 : index
    %386 = vector.load %arg9[%c0_89, %c0_90] : memref<8x32xf32, #tpu.memory_space<vmem>>, vector<8x32xf32>
    tpu.vector_store %arg9[%c0_89, %c0_90], %382 {strides = array<i32>} : memref<8x32xf32, #tpu.memory_space<vmem>>, vector<8x32xf32>,
    %c0_91 = arith.constant 0 : index
    %c0_92 = arith.constant 0 : index
    %387 = vector.load %arg8[%c0_91, %c0_92] : memref<8x32xf32, #tpu.memory_space<vmem>>, vector<8x32xf32>
    tpu.vector_store %arg8[%c0_91, %c0_92], %382 {strides = array<i32>} : memref<8x32xf32, #tpu.memory_space<vmem>>, vector<8x32xf32>,
    return
  }
  func.func @transform_0(%arg0: i32) -> (i32, i32) {
    %c0_i32 = arith.constant 0 : i32
    %c0_i32_0 = arith.constant 0 : i32
    return %arg0, %c0_i32 : i32, i32
  }
  func.func @transform_1(%arg0: i32) -> (i32, i32) {
    %c0_i32 = arith.constant 0 : i32
    %c0_i32_0 = arith.constant 0 : i32
    %c0_i32_1 = arith.constant 0 : i32
    return %c0_i32, %c0_i32_0 : i32, i32
  }
  func.func @transform_2(%arg0: i32) -> (i32, i32) {
    %c0_i32 = arith.constant 0 : i32
    %c0_i32_0 = arith.constant 0 : i32
    %c0_i32_1 = arith.constant 0 : i32
    return %c0_i32, %c0_i32_0 : i32, i32
  }
  func.func @transform_3(%arg0: i32) -> (i32, i32) {
    %c0_i32 = arith.constant 0 : i32
    %c0_i32_0 = arith.constant 0 : i32
    %c0_i32_1 = arith.constant 0 : i32
    return %c0_i32, %c0_i32_0 : i32, i32
  }
  func.func @transform_4(%arg0: i32) -> (i32, i32) {
    %c0_i32 = arith.constant 0 : i32
    %c0_i32_0 = arith.constant 0 : i32
    %c0_i32_1 = arith.constant 0 : i32
    return %c0_i32, %c0_i32_0 : i32, i32
  }
  func.func @transform_5(%arg0: i32) -> (i32, i32) {
    %c0_i32 = arith.constant 0 : i32
    %c0_i32_0 = arith.constant 0 : i32
    %c0_i32_1 = arith.constant 0 : i32
    return %c0_i32, %c0_i32_0 : i32, i32
  }
  func.func @transform_6(%arg0: i32) -> (i32, i32) {
    %c0_i32 = arith.constant 0 : i32
    %c0_i32_0 = arith.constant 0 : i32
    return %arg0, %c0_i32 : i32, i32
  }
  func.func @transform_7(%arg0: i32) -> (i32, i32) {
    %c0_i32 = arith.constant 0 : i32
    %c0_i32_0 = arith.constant 0 : i32
    %c0_i32_1 = arith.constant 0 : i32
    return %c0_i32, %c0_i32_0 : i32, i32
  }
}

</mosaic_0001>

<llo_original>
// kernel: decoder_rnn_forward.5
$region0: #{decoder_rnn_forward.5}
  #allocation0 [shape = 'u32[]', space=smem, size = 0x4, offset = 0x4, fixed_abs, tag = 'smem constant byte address 0x4 - core index']
  #allocation1 [shape = 'u32[144,128]{1,0:T(1,128)}', space=vmem, size = 0x12000, scoped, tag = 'internal scratch']
  %s0 = inlined_call_operand.vmem [shape: bf16[16,128], index: 0, kind: input, shape index: {}]
  %s1 = inlined_call_operand.vmem [shape: f32[16,1], index: 1, kind: input, shape index: {}]
  %s2 = inlined_call_operand.vmem [shape: f32[16,128], index: 2, kind: output, shape index: {}]
  %s3 = sld [smem:[#allocation0]]
  $region18: #{decoder_rnn_forward.5} parent=0
    _
  %s5 = ssub.s32 1, %s3
  %s6 = scalar_select 0, %s5, %s3
  // Predicated region
  $region2: #{decoder_rnn_forward.5} parent=0 // pred_check
    _
  $region3: #{decoder_rnn_forward.5} parent=0 // pred_check_branch
    %8 = sbr.rel (0) target = $region5
  $region4: #{decoder_rnn_forward.5} parent=0 // pred_region
    _
  $region5: #{decoder_rnn_forward.5} parent=0 // pred_fallthru
    _
  // Predicated region
  $region6: #{decoder_rnn_forward.5} parent=0 // pred_check
    _
  $region7: #{decoder_rnn_forward.5} parent=0 // pred_check_branch
    %10 = sbr.rel (0) target = $region9
  $region8: #{decoder_rnn_forward.5} parent=0 // pred_region
    _
  $region9: #{decoder_rnn_forward.5} parent=0 // pred_fallthru
    _
  %v11 = vld [vmem:[%s0] sm:$0xf]
  %v12 = vld [vmem:[%s0 + $0x4] sm:$0xf]
  %v13 = vunpack.c.l.bf16 %v11
  %v14 = vunpack.c.l.bf16 %v12
  %v15 = vld [vmem:[%s1] sm:$0xff]
  %v16 = vld [vmem:[%s1 + $0x8] sm:$0xff]
  %18 = vset.pattern.permute.xlu0 0
  %19 = vperm.xlu0 %18, %v15
  %v20 = vpop.permute.xlu0 %19
  %23 = vset.pattern.permute.xlu0 0
  %24 = vperm.xlu0 %23, %v16
  %v25 = vpop.permute.xlu0 %24
  %v27 = vsub.f32 %v13, %v20
  %v28 = vsub.f32 %v14, %v25
  %29 = vst [vmem:[%s2] sm:$0xff] %v27
  %30 = vst [vmem:[%s2 + $0x8] sm:$0xff] %v28
  // Predicated region
  $region10: #{decoder_rnn_forward.5} parent=0 // pred_check
    _
  $region11: #{decoder_rnn_forward.5} parent=0 // pred_check_branch
    %32 = sbr.rel (0) target = $region13
  $region12: #{decoder_rnn_forward.5} parent=0 // pred_region
    _
  $region13: #{decoder_rnn_forward.5} parent=0 // pred_fallthru
    _
  // Predicated region
  $region14: #{decoder_rnn_forward.5} parent=0 // pred_check
    _
  $region15: #{decoder_rnn_forward.5} parent=0 // pred_check_branch
    %34 = sbr.rel (0) target = $region17
  $region16: #{decoder_rnn_forward.5} parent=0 // pred_region
    _
  $region17: #{decoder_rnn_forward.5} parent=0 // pred_fallthru
    _

// kernel: decoder_rnn_forward.4
$region0: #{decoder_rnn_forward.4}
  #allocation0 [shape = 'u32[]', space=smem, size = 0x4, offset = 0x4, fixed_abs, tag = 'smem constant byte address 0x4 - core index']
  #allocation1 [shape = 'u32[144,128]{1,0:T(1,128)}', space=vmem, size = 0x12000, scoped, tag = 'internal scratch']
  #allocation2 [shape = 'f32[16,1]{1,0:T(8,128)}', space=vmem, size = 0x2000, scoped, tag = 'scratch operand']
  #allocation3 [shape = 'f32[16,1]{1,0:T(8,128)}', space=vmem, size = 0x2000, scoped, tag = 'scratch operand']
  %s0 = inlined_call_operand.vmem [shape: bf16[16,32], index: 0, kind: input, shape index: {}]
  %s1 = inlined_call_operand.vmem [shape: bf16[128,32], index: 1, kind: input, shape index: {}]
  %s2 = inlined_call_operand.vmem [shape: f32[1,128], index: 2, kind: input, shape index: {}]
  %s3 = inlined_call_operand.vmem [shape: bf16[16,128], index: 3, kind: output, shape index: {0}]
  %s4 = inlined_call_operand.vmem [shape: f32[16,1], index: 4, kind: output, shape index: {1}]
  %5 = xla_tuple %s3, %s4
  %s6 = sld [smem:[#allocation0]]
  $region38: #{decoder_rnn_forward.4} parent=0
    _
  %s8 = ssub.s32 1, %s6
  %s9 = scalar_select 0, %s8, %s6
  // Predicated region
  $region2: #{decoder_rnn_forward.4} parent=0 // pred_check
    _
  $region3: #{decoder_rnn_forward.4} parent=0 // pred_check_branch
    %11 = sbr.rel (0) target = $region5
  $region4: #{decoder_rnn_forward.4} parent=0 // pred_region
    _
  $region5: #{decoder_rnn_forward.4} parent=0 // pred_fallthru
    _
  // Predicated region
  $region6: #{decoder_rnn_forward.4} parent=0 // pred_check
    _
  $region7: #{decoder_rnn_forward.4} parent=0 // pred_check_branch
    %13 = sbr.rel (0) target = $region9
  $region8: #{decoder_rnn_forward.4} parent=0 // pred_region
    _
  $region9: #{decoder_rnn_forward.4} parent=0 // pred_fallthru
    _
  // Predicated region
  $region10: #{decoder_rnn_forward.4} parent=0 // pred_check
    _
  $region11: #{decoder_rnn_forward.4} parent=0 // pred_check_branch
    %15 = sbr.rel (0) target = $region13
  $region12: #{decoder_rnn_forward.4} parent=0 // pred_region
    _
  $region13: #{decoder_rnn_forward.4} parent=0 // pred_fallthru
    _
  %p17 = scmp.eq.s32.totalorder 0, 0
  // Predicated region
  $region14: #{decoder_rnn_forward.4} parent=0 // pred_check
    %p18 = pneg %p17
  $region15: #{decoder_rnn_forward.4} parent=0 // pred_check_branch
    %20 = sbr.rel (%p18) target = $region17
  $region16: #{decoder_rnn_forward.4} parent=0 // pred_region
    %vm21 = vcmask 7168
    %22 = vst.msk [vmem:[#allocation2] sm:$0xff] %vm21, -inf
    %23 = vst.msk [vmem:[#allocation2 + $0x8] sm:$0xff] %vm21, -inf
    %24 = vst.msk [vmem:[#allocation3] sm:$0xff] %vm21, 0.0
    %25 = vst.msk [vmem:[#allocation3 + $0x8] sm:$0xff] %vm21, 0.0
  $region17: #{decoder_rnn_forward.4} parent=0 // pred_fallthru
    _
  %v26 = vld [vmem:[%s0] sm:$0xf]
  %v27 = vld [vmem:[%s0 + $0x4] sm:$0xf]
  %v28 = vld [vmem:[%s1] sm:$0xf]
  %v29 = vld [vmem:[%s1 + $0x4] sm:$0xf]
  %v30 = vld [vmem:[%s1 + $0x8] sm:$0xf]
  %v31 = vld [vmem:[%s1 + $0xc] sm:$0xf]
  %v32 = vld [vmem:[%s1 + $0x10] sm:$0xf]
  %v33 = vld [vmem:[%s1 + $0x14] sm:$0xf]
  %v34 = vld [vmem:[%s1 + $0x18] sm:$0xf]
  %v35 = vld [vmem:[%s1 + $0x1c] sm:$0xf]
  %v36 = vld [vmem:[%s1 + $0x20] sm:$0xf]
  %v37 = vld [vmem:[%s1 + $0x24] sm:$0xf]
  %v38 = vld [vmem:[%s1 + $0x28] sm:$0xf]
  %v39 = vld [vmem:[%s1 + $0x2c] sm:$0xf]
  %v40 = vld [vmem:[%s1 + $0x30] sm:$0xf]
  %v41 = vld [vmem:[%s1 + $0x34] sm:$0xf]
  %v42 = vld [vmem:[%s1 + $0x38] sm:$0xf]
  %v43 = vld [vmem:[%s1 + $0x3c] sm:$0xf]
  %v44 = vld [vmem:[%s2] sm:$0x1]
  %v46 = vlaneseq
  %v47 = vshrl.u32 %v46, 7
  %v48 = vsub.s32 0, %v47
  %v49 = vrot.slane %v44, %v48
  %v53 = vunpack.c.l.b16 %v26
  %v54 = vunpack.c.l.b16 %v27
  %v55 = vpack.c.b16 %v54, %v53
  %v72 = vunpack.c.l.b16 %v28
  %v73 = vunpack.c.l.b16 %v29
  %v74 = vunpack.c.l.b16 %v30
  %v75 = vunpack.c.l.b16 %v31
  %v76 = vunpack.c.l.b16 %v32
  %v77 = vunpack.c.l.b16 %v33
  %v78 = vunpack.c.l.b16 %v34
  %v79 = vunpack.c.l.b16 %v35
  %v80 = vunpack.c.l.b16 %v36
  %v81 = vunpack.c.l.b16 %v37
  %v82 = vunpack.c.l.b16 %v38
  %v83 = vunpack.c.l.b16 %v39
  %v84 = vunpack.c.l.b16 %v40
  %v85 = vunpack.c.l.b16 %v41
  %v86 = vunpack.c.l.b16 %v42
  %v87 = vunpack.c.l.b16 %v43
  %v88 = vpack.c.b16 %v73, %v72
  %v89 = vpack.c.b16 %v75, %v74
  %v90 = vpack.c.b16 %v77, %v76
  %v91 = vpack.c.b16 %v79, %v78
  %v92 = vpack.c.b16 %v81, %v80
  %v93 = vpack.c.b16 %v83, %v82
  %v94 = vpack.c.b16 %v85, %v84
  %v95 = vpack.c.b16 %v87, %v86
  %vm96 = vcmask 261120
  %v98 = vsel %vm96, %v55, 0
  %v101 = vsel %vm96, %v88, 0
  %v104 = vsel %vm96, %v89, 0
  %v107 = vsel %vm96, %v90, 0
  %v110 = vsel %vm96, %v91, 0
  %v113 = vsel %vm96, %v92, 0
  %v116 = vsel %vm96, %v93, 0
  %v119 = vsel %vm96, %v94, 0
  %v122 = vsel %vm96, %v95, 0
  %124 = vmatprep.subr.bf16.mxu0 0
  %125 = vmatpush1.bf16.xpose.msra.mxu0 %v122
  %126 = vmatprep.subr.bf16.mxu0 0
  %127 = vmatpush1.bf16.xpose.msra.mxu0 %v119
  %128 = vmatprep.subr.bf16.mxu0 0
  %129 = vmatpush1.bf16.xpose.msra.mxu0 %v116
  %130 = vmatprep.subr.bf16.mxu0 0
  %131 = vmatpush1.bf16.xpose.msra.mxu0 %v113
  %132 = vmatprep.subr.bf16.mxu0 0
  %133 = vmatpush1.bf16.xpose.msra.mxu0 %v110
  %134 = vmatprep.subr.bf16.mxu0 0
  %135 = vmatpush1.bf16.xpose.msra.mxu0 %v107
  %136 = vmatprep.subr.bf16.mxu0 0
  %137 = vmatpush1.bf16.xpose.msra.mxu0 %v104
  %138 = vmatprep.subr.bf16.mxu0 0
  %139 = vmatpush1.bf16.xpose.msra.mxu0 %v101
  %140 = vmatprep.subr.bf16.mxu0 0
  %141 = vmatpush2.bf16.xpose.msra.mxu0 0
  %142 = vmatprep.subr.bf16.mxu0 0
  %143 = vmatpush2.bf16.xpose.msra.mxu0 0
  %144 = vmatprep.subr.bf16.mxu0 0
  %145 = vmatpush2.bf16.xpose.msra.mxu0 0
  %146 = vmatprep.subr.bf16.mxu0 0
  %147 = vmatpush2.bf16.xpose.msra.mxu0 0
  %148 = vmatprep.subr.bf16.mxu0 0
  %149 = vmatpush2.bf16.xpose.msra.mxu0 0
  %150 = vmatprep.subr.bf16.mxu0 0
  %151 = vmatpush2.bf16.xpose.msra.mxu0 0
  %152 = vmatprep.subr.bf16.mxu0 0
  %153 = vmatpush2.bf16.xpose.msra.mxu0 0
  %154 = vmatprep.subr.bf16.mxu0 0
  %155 = vmatpush2.bf16.xpose.msra.mxu0 0
  %156 = vmatprep.mubr.bf16.mxu0 0
  %157 = vmatmul.mubr.bf16.gmra.mxu0 %v98
  %v158 = vpop.f32.mrf.mxu0
  %v159 = vadd.f32 %v49, %v158
  %v160 = vpop.f32.mrf.mxu0
  %v161 = vpop.f32.mrf.mxu0
  %v162 = vadd.f32 %v49, %v161
  %v163 = vpop.f32.mrf.mxu0
  %164 = vdwg.mxu0
  %v165 = vpack.c.bf16 %v162, %v159
  %v167 = vunpack.c.l.b16 %v165
  %v168 = vunpack.c.h.b16 %v165
  %v169 = vpack.c.b16 %v167, %v167
  %v170 = vpack.c.b16 %v168, %v168
  %173 = vst [vmem:[%s3] sm:$0xf] %v169
  %174 = vst [vmem:[%s3 + $0x4] sm:$0xf] %v170
  %s175 = smul.u32 0, 128
  %v176 = vlaneseq
  %v177 = vand.u32 %v176, 127
  %v178 = vstv %s175
  %v179 = vadd.s32 %v178, %v177
  %vm180 = vcmp.lt.s32.totalorder %v179, 64
  %v181 = vsel %vm180, %v159, -inf
  %v182 = vsel %vm180, %v162, -inf
  %v183 = vld [vmem:[#allocation2] sm:$0xff]
  %v184 = vld [vmem:[#allocation2 + $0x8] sm:$0xff]
  %185 = vmax.xlane.f32.xlu0 %v181
  %v186 = vpop.xlane.xlu0 %185
  %187 = vmax.xlane.f32.xlu0 %v182
  %v188 = vpop.xlane.xlu0 %187
  %v189 = vmax.f32 %v183, %v186
  %v190 = vmax.f32 %v184, %v188
  %v191 = vld [vmem:[#allocation3] sm:$0xff]
  %v192 = vld [vmem:[#allocation3 + $0x8] sm:$0xff]
  %v193 = vsub.f32 %v183, %v189
  %v194 = vsub.f32 %v184, %v190
  %v195 = vmul.f32 %v193, 1.442695
  %v196 = vpow.pop %v195
  %v197 = vmul.f32 %v194, 1.442695
  %v198 = vpow.pop %v197
  %v199 = vmul.f32 %v191, %v196
  %v200 = vmul.f32 %v192, %v198
  %202 = vset.pattern.permute.xlu0 0
  %203 = vperm.xlu0 %202, %v189
  %v204 = vpop.permute.xlu0 %203
  %207 = vset.pattern.permute.xlu0 0
  %208 = vperm.xlu0 %207, %v190
  %v209 = vpop.permute.xlu0 %208
  %v211 = vsub.f32 %v181, %v204
  %v212 = vsub.f32 %v182, %v209
  %v213 = vmul.f32 %v211, 1.442695
  %v214 = vpow.pop %v213
  %v215 = vmul.f32 %v212, 1.442695
  %v216 = vpow.pop %v215
  %217 = vadd.xlane.f32.xlu0 %v214
  %v218 = vpop.xlane.xlu0 %217
  %219 = vadd.xlane.f32.xlu0 %v216
  %v220 = vpop.xlane.xlu0 %219
  %v221 = vadd.f32 %v199, %v218
  %v222 = vadd.f32 %v200, %v220
  %vm223 = vcmask 7168
  %224 = vst.msk [vmem:[#allocation3] sm:$0xff] %vm223, %v221
  %225 = vst.msk [vmem:[#allocation3 + $0x8] sm:$0xff] %vm223, %v222
  %226 = vst.msk [vmem:[#allocation2] sm:$0xff] %vm223, %v189
  %227 = vst.msk [vmem:[#allocation2 + $0x8] sm:$0xff] %vm223, %v190
  // Predicated region
  $region18: #{decoder_rnn_forward.4} parent=0 // pred_check
    %p228 = pneg %p17
  $region19: #{decoder_rnn_forward.4} parent=0 // pred_check_branch
    %230 = sbr.rel (%p228) target = $region21
  $region20: #{decoder_rnn_forward.4} parent=0 // pred_region
    %v231 = vld [vmem:[#allocation2] sm:$0xff]
    %v232 = vld [vmem:[#allocation2 + $0x8] sm:$0xff]
    %v233 = vld [vmem:[#allocation3] sm:$0xff]
    %v234 = vld [vmem:[#allocation3 + $0x8] sm:$0xff]
    %v235 = vlog2.pop %v233
    %v236 = vmul.f32 %v235, 0.6931472
    %v237 = vlog2.pop %v234
    %v238 = vmul.f32 %v237, 0.6931472
    %v239 = vadd.f32 %v231, %v236
    %v240 = vadd.f32 %v232, %v238
    %241 = vst.msk [vmem:[%s4] sm:$0xff] %vm223, %v239
    %242 = vst.msk [vmem:[%s4 + $0x8] sm:$0xff] %vm223, %v240
  $region21: #{decoder_rnn_forward.4} parent=0 // pred_fallthru
    _
  // Predicated region
  $region22: #{decoder_rnn_forward.4} parent=0 // pred_check
    _
  $region23: #{decoder_rnn_forward.4} parent=0 // pred_check_branch
    %244 = sbr.rel (0) target = $region25
  $region24: #{decoder_rnn_forward.4} parent=0 // pred_region
    _
  $region25: #{decoder_rnn_forward.4} parent=0 // pred_fallthru
    _
  // Predicated region
  $region26: #{decoder_rnn_forward.4} parent=0 // pred_check
    _
  $region27: #{decoder_rnn_forward.4} parent=0 // pred_check_branch
    %246 = sbr.rel (0) target = $region29
  $region28: #{decoder_rnn_forward.4} parent=0 // pred_region
    _
  $region29: #{decoder_rnn_forward.4} parent=0 // pred_fallthru
    _
  // Predicated region
  $region30: #{decoder_rnn_forward.4} parent=0 // pred_check
    _
  $region31: #{decoder_rnn_forward.4} parent=0 // pred_check_branch
    %248 = sbr.rel (0) target = $region33
  $region32: #{decoder_rnn_forward.4} parent=0 // pred_region
    _
  $region33: #{decoder_rnn_forward.4} parent=0 // pred_fallthru
    _
  // Predicated region
  $region34: #{decoder_rnn_forward.4} parent=0 // pred_check
    _
  $region35: #{decoder_rnn_forward.4} parent=0 // pred_check_branch
    %250 = sbr.rel (0) target = $region37
  $region36: #{decoder_rnn_forward.4} parent=0 // pred_region
    _
  $region37: #{decoder_rnn_forward.4} parent=0 // pred_fallthru
    _

// kernel: decoder_rnn_forward.3
$region0: #{decoder_rnn_forward.3}
  #allocation0 [shape = 'u32[]', space=smem, size = 0x4, offset = 0x4, fixed_abs, tag = 'smem constant byte address 0x4 - core index']
  #allocation1 [shape = 'u32[144,128]{1,0:T(1,128)}', space=vmem, size = 0x12000, scoped, tag = 'internal scratch']
  #allocation2 [shape = 'f32[8,32]{1,0:T(8,128)}', space=vmem, size = 0x1000, scoped, tag = 'scratch operand']
  #allocation3 [shape = 'f32[64,96]{1,0:T(8,128)}', space=vmem, size = 0x8000, scoped, tag = 'scratch operand']
  %s0 = inlined_call_operand.vmem [shape: bf16[64,32], index: 0, kind: input, shape index: {}]
  %s1 = inlined_call_operand.vmem [shape: f32[8,32], index: 1, kind: input, shape index: {}]
  %s2 = inlined_call_operand.vmem [shape: bf16[96,32], index: 2, kind: input, shape index: {}]
  %s3 = inlined_call_operand.vmem [shape: bf16[96,32], index: 3, kind: input, shape index: {}]
  %s4 = inlined_call_operand.vmem [shape: f32[1,96], index: 4, kind: input, shape index: {}]
  %s5 = inlined_call_operand.vmem [shape: f32[1,32], index: 5, kind: input, shape index: {}]
  %s6 = inlined_call_operand.vmem [shape: bf16[64,32], index: 6, kind: output, shape index: {0}]
  %s7 = inlined_call_operand.vmem [shape: f32[8,32], index: 7, kind: output, shape index: {1}]
  %8 = xla_tuple %s6, %s7
  %s9 = sld [smem:[#allocation0]]
  $region46: #{decoder_rnn_forward.3} parent=0
    _
  %s11 = ssub.s32 1, %s9
  %s12 = scalar_select 0, %s11, %s9
  // Predicated region
  $region2: #{decoder_rnn_forward.3} parent=0 // pred_check
    _
  $region3: #{decoder_rnn_forward.3} parent=0 // pred_check_branch
    %14 = sbr.rel (0) target = $region5
  $region4: #{decoder_rnn_forward.3} parent=0 // pred_region
    _
  $region5: #{decoder_rnn_forward.3} parent=0 // pred_fallthru
    _
  // Predicated region
  $region6: #{decoder_rnn_forward.3} parent=0 // pred_check
    _
  $region7: #{decoder_rnn_forward.3} parent=0 // pred_check_branch
    %16 = sbr.rel (0) target = $region9
  $region8: #{decoder_rnn_forward.3} parent=0 // pred_region
    _
  $region9: #{decoder_rnn_forward.3} parent=0 // pred_fallthru
    _
  // Predicated region
  $region10: #{decoder_rnn_forward.3} parent=0 // pred_check
    _
  $region11: #{decoder_rnn_forward.3} parent=0 // pred_check_branch
    %18 = sbr.rel (0) target = $region13
  $region12: #{decoder_rnn_forward.3} parent=0 // pred_region
    _
  $region13: #{decoder_rnn_forward.3} parent=0 // pred_fallthru
    _
  // Predicated region
  $region14: #{decoder_rnn_forward.3} parent=0 // pred_check
    _
  $region15: #{decoder_rnn_forward.3} parent=0 // pred_check_branch
    %20 = sbr.rel (0) target = $region17
  $region16: #{decoder_rnn_forward.3} parent=0 // pred_region
    _
  $region17: #{decoder_rnn_forward.3} parent=0 // pred_fallthru
    _
  // Predicated region
  $region18: #{decoder_rnn_forward.3} parent=0 // pred_check
    _
  $region19: #{decoder_rnn_forward.3} parent=0 // pred_check_branch
    %22 = sbr.rel (0) target = $region21
  $region20: #{decoder_rnn_forward.3} parent=0 // pred_region
    _
  $region21: #{decoder_rnn_forward.3} parent=0 // pred_fallthru
    _
  // Predicated region
  $region22: #{decoder_rnn_forward.3} parent=0 // pred_check
    _
  $region23: #{decoder_rnn_forward.3} parent=0 // pred_check_branch
    %24 = sbr.rel (0) target = $region25
  $region24: #{decoder_rnn_forward.3} parent=0 // pred_region
    _
  $region25: #{decoder_rnn_forward.3} parent=0 // pred_fallthru
    _
  %p26 = scmp.eq.s32.totalorder 0, 0
  // Predicated region
  $region26: #{decoder_rnn_forward.3} parent=0 // pred_check
    %p27 = pneg %p26
  $region27: #{decoder_rnn_forward.3} parent=0 // pred_check_branch
    %29 = sbr.rel (%p27) target = $region29
  $region28: #{decoder_rnn_forward.3} parent=0 // pred_region
    %v30 = vld [vmem:[%s1] sm:$0xff]
    %vm31 = vcmask 261120
    %32 = vst.msk [vmem:[#allocation2] sm:$0xff] %vm31, %v30
  $region29: #{decoder_rnn_forward.3} parent=0 // pred_fallthru
    _
  %v33 = vld [vmem:[%s0] sm:$0xf]
  %v34 = vld [vmem:[%s0 + $0x4] sm:$0xf]
  %v35 = vld [vmem:[%s0 + $0x8] sm:$0xf]
  %v36 = vld [vmem:[%s0 + $0xc] sm:$0xf]
  %v37 = vld [vmem:[%s0 + $0x10] sm:$0xf]
  %v38 = vld [vmem:[%s0 + $0x14] sm:$0xf]
  %v39 = vld [vmem:[%s0 + $0x18] sm:$0xf]
  %v40 = vld [vmem:[%s0 + $0x1c] sm:$0xf]
  %v41 = vmax.bf16 %v33, 0
  %v42 = vmax.bf16 %v34, 0
  %v43 = vmax.bf16 %v35, 0
  %v44 = vmax.bf16 %v36, 0
  %v45 = vmax.bf16 %v37, 0
  %v46 = vmax.bf16 %v38, 0
  %v47 = vmax.bf16 %v39, 0
  %v48 = vmax.bf16 %v40, 0
  %v49 = vld [vmem:[%s2] sm:$0xf]
  %v50 = vld [vmem:[%s2 + $0x4] sm:$0xf]
  %v51 = vld [vmem:[%s2 + $0x8] sm:$0xf]
  %v52 = vld [vmem:[%s2 + $0xc] sm:$0xf]
  %v53 = vld [vmem:[%s2 + $0x10] sm:$0xf]
  %v54 = vld [vmem:[%s2 + $0x14] sm:$0xf]
  %v55 = vld [vmem:[%s2 + $0x18] sm:$0xf]
  %v56 = vld [vmem:[%s2 + $0x1c] sm:$0xf]
  %v57 = vld [vmem:[%s2 + $0x20] sm:$0xf]
  %v58 = vld [vmem:[%s2 + $0x24] sm:$0xf]
  %v59 = vld [vmem:[%s2 + $0x28] sm:$0xf]
  %v60 = vld [vmem:[%s2 + $0x2c] sm:$0xf]
  %v61 = vld [vmem:[%s4] sm:$0x1]
  %v63 = vlaneseq
  %v64 = vshrl.u32 %v63, 7
  %v65 = vsub.s32 0, %v64
  %v66 = vrot.slane %v61, %v65
  %v76 = vunpack.c.l.b16 %v41
  %v77 = vunpack.c.l.b16 %v42
  %v78 = vunpack.c.l.b16 %v43
  %v79 = vunpack.c.l.b16 %v44
  %v80 = vunpack.c.l.b16 %v45
  %v81 = vunpack.c.l.b16 %v46
  %v82 = vunpack.c.l.b16 %v47
  %v83 = vunpack.c.l.b16 %v48
  %v84 = vpack.c.b16 %v77, %v76
  %v85 = vpack.c.b16 %v79, %v78
  %v86 = vpack.c.b16 %v81, %v80
  %v87 = vpack.c.b16 %v83, %v82
  %v100 = vunpack.c.l.b16 %v49
  %v101 = vunpack.c.l.b16 %v50
  %v102 = vunpack.c.l.b16 %v51
  %v103 = vunpack.c.l.b16 %v52
  %v104 = vunpack.c.l.b16 %v53
  %v105 = vunpack.c.l.b16 %v54
  %v106 = vunpack.c.l.b16 %v55
  %v107 = vunpack.c.l.b16 %v56
  %v108 = vunpack.c.l.b16 %v57
  %v109 = vunpack.c.l.b16 %v58
  %v110 = vunpack.c.l.b16 %v59
  %v111 = vunpack.c.l.b16 %v60
  %v112 = vpack.c.b16 %v101, %v100
  %v113 = vpack.c.b16 %v103, %v102
  %v114 = vpack.c.b16 %v105, %v104
  %v115 = vpack.c.b16 %v107, %v106
  %v116 = vpack.c.b16 %v109, %v108
  %v117 = vpack.c.b16 %v111, %v110
  %vm118 = vcmask 261120
  %v120 = vsel %vm118, %v84, 0
  %v123 = vsel %vm118, %v85, 0
  %v126 = vsel %vm118, %v86, 0
  %v129 = vsel %vm118, %v87, 0
  %v132 = vsel %vm118, %v112, 0
  %v135 = vsel %vm118, %v113, 0
  %v138 = vsel %vm118, %v114, 0
  %v141 = vsel %vm118, %v115, 0
  %v144 = vsel %vm118, %v116, 0
  %v147 = vsel %vm118, %v117, 0
  %149 = vmatprep.subr.bf16.mxu0 0
  %150 = vmatpush1.bf16.xpose.msra.mxu0 0
  %151 = vmatprep.subr.bf16.mxu0 0
  %152 = vmatpush1.bf16.xpose.msra.mxu0 0
  %153 = vmatprep.subr.bf16.mxu0 0
  %154 = vmatpush1.bf16.xpose.msra.mxu0 %v147
  %155 = vmatprep.subr.bf16.mxu0 0
  %156 = vmatpush1.bf16.xpose.msra.mxu0 %v144
  %157 = vmatprep.subr.bf16.mxu0 0
  %158 = vmatpush1.bf16.xpose.msra.mxu0 %v141
  %159 = vmatprep.subr.bf16.mxu0 0
  %160 = vmatpush1.bf16.xpose.msra.mxu0 %v138
  %161 = vmatprep.subr.bf16.mxu0 0
  %162 = vmatpush1.bf16.xpose.msra.mxu0 %v135
  %163 = vmatprep.subr.bf16.mxu0 0
  %164 = vmatpush1.bf16.xpose.msra.mxu0 %v132
  %165 = vmatprep.subr.bf16.mxu0 0
  %166 = vmatpush2.bf16.xpose.msra.mxu0 0
  %167 = vmatprep.subr.bf16.mxu0 0
  %168 = vmatpush2.bf16.xpose.msra.mxu0 0
  %169 = vmatprep.subr.bf16.mxu0 0
  %170 = vmatpush2.bf16.xpose.msra.mxu0 0
  %171 = vmatprep.subr.bf16.mxu0 0
  %172 = vmatpush2.bf16.xpose.msra.mxu0 0
  %173 = vmatprep.subr.bf16.mxu0 0
  %174 = vmatpush2.bf16.xpose.msra.mxu0 0
  %175 = vmatprep.subr.bf16.mxu0 0
  %176 = vmatpush2.bf16.xpose.msra.mxu0 0
  %177 = vmatprep.subr.bf16.mxu0 0
  %178 = vmatpush2.bf16.xpose.msra.mxu0 0
  %179 = vmatprep.subr.bf16.mxu0 0
  %180 = vmatpush2.bf16.xpose.msra.mxu0 0
  %181 = vmatprep.mubr.bf16.mxu0 0
  %182 = vmatmul.mubr.bf16.gmra.mxu0 %v120
  %v183 = vpop.f32.mrf.mxu0
  %v184 = vadd.f32 %v66, %v183
  %v185 = vpop.f32.mrf.mxu0
  %v186 = vpop.f32.mrf.mxu0
  %v187 = vadd.f32 %v66, %v186
  %v188 = vpop.f32.mrf.mxu0
  %189 = vmatprep.mubr.bf16.mxu0 0
  %190 = vmatmul.mubr.bf16.gmra.mxu0 %v123
  %v191 = vpop.f32.mrf.mxu0
  %v192 = vadd.f32 %v66, %v191
  %v193 = vpop.f32.mrf.mxu0
  %v194 = vpop.f32.mrf.mxu0
  %v195 = vadd.f32 %v66, %v194
  %v196 = vpop.f32.mrf.mxu0
  %197 = vmatprep.mubr.bf16.mxu0 0
  %198 = vmatmul.mubr.bf16.gmra.mxu0 %v126
  %v199 = vpop.f32.mrf.mxu0
  %v200 = vadd.f32 %v66, %v199
  %v201 = vpop.f32.mrf.mxu0
  %v202 = vpop.f32.mrf.mxu0
  %v203 = vadd.f32 %v66, %v202
  %v204 = vpop.f32.mrf.mxu0
  %205 = vmatprep.mubr.bf16.mxu0 0
  %206 = vmatmul.mubr.bf16.gmra.mxu0 %v129
  %v207 = vpop.f32.mrf.mxu0
  %v208 = vadd.f32 %v66, %v207
  %v209 = vpop.f32.mrf.mxu0
  %v210 = vpop.f32.mrf.mxu0
  %v211 = vadd.f32 %v66, %v210
  %v212 = vpop.f32.mrf.mxu0
  %213 = vdwg.mxu0
  %vm214 = vcmask 785408
  %215 = vst.msk [vmem:[#allocation3] sm:$0xff] %vm214, %v184
  %216 = vst.msk [vmem:[#allocation3 + $0x8] sm:$0xff] %vm214, %v187
  %217 = vst.msk [vmem:[#allocation3 + $0x10] sm:$0xff] %vm214, %v192
  %218 = vst.msk [vmem:[#allocation3 + $0x18] sm:$0xff] %vm214, %v195
  %219 = vst.msk [vmem:[#allocation3 + $0x20] sm:$0xff] %vm214, %v200
  %220 = vst.msk [vmem:[#allocation3 + $0x28] sm:$0xff] %vm214, %v203
  %221 = vst.msk [vmem:[#allocation3 + $0x30] sm:$0xff] %vm214, %v208
  %222 = vst.msk [vmem:[#allocation3 + $0x38] sm:$0xff] %vm214, %v211
  %v223 = vld [vmem:[%s3] sm:$0xf]
  %v224 = vld [vmem:[%s3 + $0x4] sm:$0xf]
  %v225 = vld [vmem:[%s3 + $0x8] sm:$0xf]
  %v226 = vld [vmem:[%s3 + $0xc] sm:$0xf]
  %v227 = vld [vmem:[%s3 + $0x10] sm:$0xf]
  %v228 = vld [vmem:[%s3 + $0x14] sm:$0xf]
  %v229 = vld [vmem:[%s3 + $0x18] sm:$0xf]
  %v230 = vld [vmem:[%s3 + $0x1c] sm:$0xf]
  %v231 = vld [vmem:[%s3 + $0x20] sm:$0xf]
  %v232 = vld [vmem:[%s3 + $0x24] sm:$0xf]
  %v233 = vld [vmem:[%s3 + $0x28] sm:$0xf]
  %v234 = vld [vmem:[%s3 + $0x2c] sm:$0xf]
  %v235 = vld [vmem:[%s5] sm:$0x1]
  %v237 = vlaneseq
  %v238 = vshrl.u32 %v237, 7
  %v239 = vsub.s32 0, %v238
  %v240 = vrot.slane %v235, %v239
  %s241 = smul.u32 0, 8
  %v242 = vld [vmem:[#allocation2] sm:$0xff]
  %v243 = vld [vmem:[#allocation3] sm:$0xff]
  %v244 = vpack.c.bf16 %v242, %v242
  %v257 = vunpack.c.l.b16 %v223
  %v258 = vunpack.c.l.b16 %v224
  %v259 = vunpack.c.l.b16 %v225
  %v260 = vunpack.c.l.b16 %v226
  %v261 = vunpack.c.l.b16 %v227
  %v262 = vunpack.c.l.b16 %v228
  %v263 = vunpack.c.l.b16 %v229
  %v264 = vunpack.c.l.b16 %v230
  %v265 = vunpack.c.l.b16 %v231
  %v266 = vunpack.c.l.b16 %v232
  %v267 = vunpack.c.l.b16 %v233
  %v268 = vunpack.c.l.b16 %v234
  %v269 = vpack.c.b16 %v258, %v257
  %v270 = vpack.c.b16 %v260, %v259
  %v271 = vpack.c.b16 %v262, %v261
  %v272 = vpack.c.b16 %v264, %v263
  %v273 = vpack.c.b16 %v266, %v265
  %v274 = vpack.c.b16 %v268, %v267
  %v276 = vsel %vm118, %v244, 0
  %v279 = vsel %vm118, %v269, 0
  %v282 = vsel %vm118, %v270, 0
  %v285 = vsel %vm118, %v271, 0
  %v288 = vsel %vm118, %v272, 0
  %v291 = vsel %vm118, %v273, 0
  %v294 = vsel %vm118, %v274, 0
  %296 = vmatprep.subr.bf16.mxu0 0
  %297 = vmatpush1.bf16.xpose.msra.mxu0 0
  %298 = vmatprep.subr.bf16.mxu0 0
  %299 = vmatpush1.bf16.xpose.msra.mxu0 0
  %300 = vmatprep.subr.bf16.mxu0 0
  %301 = vmatpush1.bf16.xpose.msra.mxu0 %v294
  %302 = vmatprep.subr.bf16.mxu0 0
  %303 = vmatpush1.bf16.xpose.msra.mxu0 %v291
  %304 = vmatprep.subr.bf16.mxu0 0
  %305 = vmatpush1.bf16.xpose.msra.mxu0 %v288
  %306 = vmatprep.subr.bf16.mxu0 0
  %307 = vmatpush1.bf16.xpose.msra.mxu0 %v285
  %308 = vmatprep.subr.bf16.mxu0 0
  %309 = vmatpush1.bf16.xpose.msra.mxu0 %v282
  %310 = vmatprep.subr.bf16.mxu0 0
  %311 = vmatpush1.bf16.xpose.msra.mxu0 %v279
  %312 = vmatprep.subr.bf16.mxu0 0
  %313 = vmatpush2.bf16.xpose.msra.mxu0 0
  %314 = vmatprep.subr.bf16.mxu0 0
  %315 = vmatpush2.bf16.xpose.msra.mxu0 0
  %316 = vmatprep.subr.bf16.mxu0 0
  %317 = vmatpush2.bf16.xpose.msra.mxu0 0
  %318 = vmatprep.subr.bf16.mxu0 0
  %319 = vmatpush2.bf16.xpose.msra.mxu0 0
  %320 = vmatprep.subr.bf16.mxu0 0
  %321 = vmatpush2.bf16.xpose.msra.mxu0 0
  %322 = vmatprep.subr.bf16.mxu0 0
  %323 = vmatpush2.bf16.xpose.msra.mxu0 0
  %324 = vmatprep.subr.bf16.mxu0 0
  %325 = vmatpush2.bf16.xpose.msra.mxu0 0
  %326 = vmatprep.subr.bf16.mxu0 0
  %327 = vmatpush2.bf16.xpose.msra.mxu0 0
  %328 = vmatprep.mubr.bf16.mxu0 0
  %329 = vmatmul.mubr.bf16.gmra.mxu0 %v276
  %v330 = vpop.f32.mrf.mxu0
  %v331 = vadd.f32 0.0, %v330
  %v332 = vpop.f32.mrf.mxu0
  %v333 = vpop.f32.mrf.mxu0
  %v334 = vpop.f32.mrf.mxu0
  %335 = vdwg.mxu0
  %v336 = vadd.f32 %v243, %v331
  %v337 = vxor.u32 %v336, 2147483648
  %v338 = vmul.f32 %v337, 1.442695
  %v339 = vpow.pop %v338
  %v340 = vadd.f32 %v339, 1.0
  %v341 = vrcp.pop %v340
  %v342 = vmul.f32 1.0, %v341
  %343 = vrot.lane.b32.xlu0 %v240, 64
  %v344 = vpop.permute.xlu0 %343
  %v346 = vadd.f32 %v331, %v344
  %348 = vrot.lane.b32.xlu0 %v346, 64
  %v349 = vpop.permute.xlu0 %348
  %v351 = vmul.f32 %v342, %v349
  %353 = vrot.lane.b32.xlu0 %v351, 64
  %v354 = vpop.permute.xlu0 %353
  %v356 = vadd.f32 %v243, %v354
  %v357 = vtanh.pop %v356
  %v358 = vsub.f32 1.0, %v342
  %360 = vrot.lane.b32.xlu0 %v357, 96
  %v361 = vpop.permute.xlu0 %360
  %v363 = vmul.f32 %v358, %v361
  %365 = vrot.lane.b32.xlu0 %v242, 32
  %v366 = vpop.permute.xlu0 %365
  %v368 = vmul.f32 %v342, %v366
  %v369 = vadd.f32 %v363, %v368
  %p370 = scmp.lt.s32.totalorder %s241, 8
  %s371 = scalar_select %p370, 1, 0
  %s372 = scvt.s32.f32 %s371
  %v373 = vstv %s372
  %v374 = vmul.f32 %v373, %v369
  %s375 = ssub.f32 1.0, %s372
  %v376 = vstv %s375
  %v377 = vmul.f32 %v376, %v242
  %379 = vrot.lane.b32.xlu0 %v377, 32
  %v380 = vpop.permute.xlu0 %379
  %v382 = vadd.f32 %v374, %v380
  %v383 = vpack.c.bf16 %v382, %v382
  %v385 = vunpack.c.l.b16 %v383
  %v386 = vpack.c.b16 %v385, %v385
  %387 = vrot.lane.b32.xlu0 %v386, 96
  %v388 = vpop.permute.xlu0 %387
  %vm390 = vcmask 257024
  %391 = vst.msk [vmem:[%s6] sm:$0xf] %vm390, %v388
  %s392 = scalar_lea.vmem [#allocation3], 8
  %v393 = vld [vmem:[%s392] sm:$0xff]
  %394 = vrot.lane.b32.xlu0 %v383, 96
  %v395 = vpop.permute.xlu0 %394
  %v397 = vsel %vm118, %v395, 0
  %399 = vmatprep.subr.bf16.mxu0 0
  %400 = vmatpush1.bf16.xpose.msra.mxu0 0
  %401 = vmatprep.subr.bf16.mxu0 0
  %402 = vmatpush1.bf16.xpose.msra.mxu0 0
  %403 = vmatprep.subr.bf16.mxu0 0
  %404 = vmatpush1.bf16.xpose.msra.mxu0 %v294
  %405 = vmatprep.subr.bf16.mxu0 0
  %406 = vmatpush1.bf16.xpose.msra.mxu0 %v291
  %407 = vmatprep.subr.bf16.mxu0 0
  %408 = vmatpush1.bf16.xpose.msra.mxu0 %v288
  %409 = vmatprep.subr.bf16.mxu0 0
  %410 = vmatpush1.bf16.xpose.msra.mxu0 %v285
  %411 = vmatprep.subr.bf16.mxu0 0
  %412 = vmatpush1.bf16.xpose.msra.mxu0 %v282
  %413 = vmatprep.subr.bf16.mxu0 0
  %414 = vmatpush1.bf16.xpose.msra.mxu0 %v279
  %415 = vmatprep.subr.bf16.mxu0 0
  %416 = vmatpush2.bf16.xpose.msra.mxu0 0
  %417 = vmatprep.subr.bf16.mxu0 0
  %418 = vmatpush2.bf16.xpose.msra.mxu0 0
  %419 = vmatprep.subr.bf16.mxu0 0
  %420 = vmatpush2.bf16.xpose.msra.mxu0 0
  %421 = vmatprep.subr.bf16.mxu0 0
  %422 = vmatpush2.bf16.xpose.msra.mxu0 0
  %423 = vmatprep.subr.bf16.mxu0 0
  %424 = vmatpush2.bf16.xpose.msra.mxu0 0
  %425 = vmatprep.subr.bf16.mxu0 0
  %426 = vmatpush2.bf16.xpose.msra.mxu0 0
  %427 = vmatprep.subr.bf16.mxu0 0
  %428 = vmatpush2.bf16.xpose.msra.mxu0 0
  %429 = vmatprep.subr.bf16.mxu0 0
  %430 = vmatpush2.bf16.xpose.msra.mxu0 0
  %431 = vmatprep.mubr.bf16.mxu0 0
  %432 = vmatmul.mubr.bf16.gmra.mxu0 %v397
  %v433 = vpop.f32.mrf.mxu0
  %v434 = vadd.f32 0.0, %v433
  %v435 = vpop.f32.mrf.mxu0
  %v436 = vpop.f32.mrf.mxu0
  %v437 = vpop.f32.mrf.mxu0
  %438 = vdwg.mxu0
  %v439 = vadd.f32 %v393, %v434
  %v440 = vxor.u32 %v439, 2147483648
  %v441 = vmul.f32 %v440, 1.442695
  %v442 = vpow.pop %v441
  %v443 = vadd.f32 %v442, 1.0
  %v444 = vrcp.pop %v443
  %v445 = vmul.f32 1.0, %v444
  %v446 = vadd.f32 %v434, %v344
  %448 = vrot.lane.b32.xlu0 %v446, 64
  %v449 = vpop.permute.xlu0 %448
  %v451 = vmul.f32 %v445, %v449
  %453 = vrot.lane.b32.xlu0 %v451, 64
  %v454 = vpop.permute.xlu0 %453
  %v456 = vadd.f32 %v393, %v454
  %v457 = vtanh.pop %v456
  %v458 = vsub.f32 1.0, %v445
  %460 = vrot.lane.b32.xlu0 %v457, 96
  %v461 = vpop.permute.xlu0 %460
  %v463 = vmul.f32 %v458, %v461
  %v464 = vmul.f32 %v445, %v382
  %v465 = vadd.f32 %v463, %v464
  %s466 = sadd.s32 %s241, 1
  %p467 = scmp.lt.s32.totalorder %s466, 8
  %s468 = scalar_select %p467, 1, 0
  %s469 = scvt.s32.f32 %s468
  %v470 = vstv %s469
  %v471 = vmul.f32 %v470, %v465
  %s472 = ssub.f32 1.0, %s469
  %v473 = vstv %s472
  %v474 = vmul.f32 %v473, %v382
  %v475 = vadd.f32 %v471, %v474
  %v476 = vpack.c.bf16 %v475, %v475
  %v478 = vunpack.c.l.b16 %v476
  %v479 = vpack.c.b16 %v478, %v478
  %480 = vrot.lane.b32.xlu0 %v479, 96
  %v481 = vpop.permute.xlu0 %480
  %s483 = scalar_lea.vmem %s6, 4
  %484 = vst.msk [vmem:[%s483] sm:$0xf] %vm390, %v481
  %s485 = scalar_lea.vmem [#allocation3], 16
  %v486 = vld [vmem:[%s485] sm:$0xff]
  %487 = vrot.lane.b32.xlu0 %v476, 96
  %v488 = vpop.permute.xlu0 %487
  %v490 = vsel %vm118, %v488, 0
  %492 = vmatprep.subr.bf16.mxu0 0
  %493 = vmatpush1.bf16.xpose.msra.mxu0 0
  %494 = vmatprep.subr.bf16.mxu0 0
  %495 = vmatpush1.bf16.xpose.msra.mxu0 0
  %496 = vmatprep.subr.bf16.mxu0 0
  %497 = vmatpush1.bf16.xpose.msra.mxu0 %v294
  %498 = vmatprep.subr.bf16.mxu0 0
  %499 = vmatpush1.bf16.xpose.msra.mxu0 %v291
  %500 = vmatprep.subr.bf16.mxu0 0
  %501 = vmatpush1.bf16.xpose.msra.mxu0 %v288
  %502 = vmatprep.subr.bf16.mxu0 0
  %503 = vmatpush1.bf16.xpose.msra.mxu0 %v285
  %504 = vmatprep.subr.bf16.mxu0 0
  %505 = vmatpush1.bf16.xpose.msra.mxu0 %v282
  %506 = vmatprep.subr.bf16.mxu0 0
  %507 = vmatpush1.bf16.xpose.msra.mxu0 %v279
  %508 = vmatprep.subr.bf16.mxu0 0
  %509 = vmatpush2.bf16.xpose.msra.mxu0 0
  %510 = vmatprep.subr.bf16.mxu0 0
  %511 = vmatpush2.bf16.xpose.msra.mxu0 0
  %512 = vmatprep.subr.bf16.mxu0 0
  %513 = vmatpush2.bf16.xpose.msra.mxu0 0
  %514 = vmatprep.subr.bf16.mxu0 0
  %515 = vmatpush2.bf16.xpose.msra.mxu0 0
  %516 = vmatprep.subr.bf16.mxu0 0
  %517 = vmatpush2.bf16.xpose.msra.mxu0 0
  %518 = vmatprep.subr.bf16.mxu0 0
  %519 = vmatpush2.bf16.xpose.msra.mxu0 0
  %520 = vmatprep.subr.bf16.mxu0 0
  %521 = vmatpush2.bf16.xpose.msra.mxu0 0
  %522 = vmatprep.subr.bf16.mxu0 0
  %523 = vmatpush2.bf16.xpose.msra.mxu0 0
  %524 = vmatprep.mubr.bf16.mxu0 0
  %525 = vmatmul.mubr.bf16.gmra.mxu0 %v490
  %v526 = vpop.f32.mrf.mxu0
  %v527 = vadd.f32 0.0, %v526
  %v528 = vpop.f32.mrf.mxu0
  %v529 = vpop.f32.mrf.mxu0
  %v530 = vpop.f32.mrf.mxu0
  %531 = vdwg.mxu0
  %v532 = vadd.f32 %v486, %v527
  %v533 = vxor.u32 %v532, 2147483648
  %v534 = vmul.f32 %v533, 1.442695
  %v535 = vpow.pop %v534
  %v536 = vadd.f32 %v535, 1.0
  %v537 = vrcp.pop %v536
  %v538 = vmul.f32 1.0, %v537
  %v539 = vadd.f32 %v527, %v344
  %541 = vrot.lane.b32.xlu0 %v539, 64
  %v542 = vpop.permute.xlu0 %541
  %v544 = vmul.f32 %v538, %v542
  %546 = vrot.lane.b32.xlu0 %v544, 64
  %v547 = vpop.permute.xlu0 %546
  %v549 = vadd.f32 %v486, %v547
  %v550 = vtanh.pop %v549
  %v551 = vsub.f32 1.0, %v538
  %553 = vrot.lane.b32.xlu0 %v550, 96
  %v554 = vpop.permute.xlu0 %553
  %v556 = vmul.f32 %v551, %v554
  %v557 = vmul.f32 %v538, %v475
  %v558 = vadd.f32 %v556, %v557
  %s559 = sadd.s32 %s241, 2
  %p560 = scmp.lt.s32.totalorder %s559, 8
  %s561 = scalar_select %p560, 1, 0
  %s562 = scvt.s32.f32 %s561
  %v563 = vstv %s562
  %v564 = vmul.f32 %v563, %v558
  %s565 = ssub.f32 1.0, %s562
  %v566 = vstv %s565
  %v567 = vmul.f32 %v566, %v475
  %v568 = vadd.f32 %v564, %v567
  %v569 = vpack.c.bf16 %v568, %v568
  %v571 = vunpack.c.l.b16 %v569
  %v572 = vpack.c.b16 %v571, %v571
  %573 = vrot.lane.b32.xlu0 %v572, 96
  %v574 = vpop.permute.xlu0 %573
  %s576 = scalar_lea.vmem %s6, 8
  %577 = vst.msk [vmem:[%s576] sm:$0xf] %vm390, %v574
  %s578 = scalar_lea.vmem [#allocation3], 24
  %v579 = vld [vmem:[%s578] sm:$0xff]
  %580 = vrot.lane.b32.xlu0 %v569, 96
  %v581 = vpop.permute.xlu0 %580
  %v583 = vsel %vm118, %v581, 0
  %585 = vmatprep.subr.bf16.mxu0 0
  %586 = vmatpush1.bf16.xpose.msra.mxu0 0
  %587 = vmatprep.subr.bf16.mxu0 0
  %588 = vmatpush1.bf16.xpose.msra.mxu0 0
  %589 = vmatprep.subr.bf16.mxu0 0
  %590 = vmatpush1.bf16.xpose.msra.mxu0 %v294
  %591 = vmatprep.subr.bf16.mxu0 0
  %592 = vmatpush1.bf16.xpose.msra.mxu0 %v291
  %593 = vmatprep.subr.bf16.mxu0 0
  %594 = vmatpush1.bf16.xpose.msra.mxu0 %v288
  %595 = vmatprep.subr.bf16.mxu0 0
  %596 = vmatpush1.bf16.xpose.msra.mxu0 %v285
  %597 = vmatprep.subr.bf16.mxu0 0
  %598 = vmatpush1.bf16.xpose.msra.mxu0 %v282
  %599 = vmatprep.subr.bf16.mxu0 0
  %600 = vmatpush1.bf16.xpose.msra.mxu0 %v279
  %601 = vmatprep.subr.bf16.mxu0 0
  %602 = vmatpush2.bf16.xpose.msra.mxu0 0
  %603 = vmatprep.subr.bf16.mxu0 0
  %604 = vmatpush2.bf16.xpose.msra.mxu0 0
  %605 = vmatprep.subr.bf16.mxu0 0
  %606 = vmatpush2.bf16.xpose.msra.mxu0 0
  %607 = vmatprep.subr.bf16.mxu0 0
  %608 = vmatpush2.bf16.xpose.msra.mxu0 0
  %609 = vmatprep.subr.bf16.mxu0 0
  %610 = vmatpush2.bf16.xpose.msra.mxu0 0
  %611 = vmatprep.subr.bf16.mxu0 0
  %612 = vmatpush2.bf16.xpose.msra.mxu0 0
  %613 = vmatprep.subr.bf16.mxu0 0
  %614 = vmatpush2.bf16.xpose.msra.mxu0 0
  %615 = vmatprep.subr.bf16.mxu0 0
  %616 = vmatpush2.bf16.xpose.msra.mxu0 0
  %617 = vmatprep.mubr.bf16.mxu0 0
  %618 = vmatmul.mubr.bf16.gmra.mxu0 %v583
  %v619 = vpop.f32.mrf.mxu0
  %v620 = vadd.f32 0.0, %v619
  %v621 = vpop.f32.mrf.mxu0
  %v622 = vpop.f32.mrf.mxu0
  %v623 = vpop.f32.mrf.mxu0
  %624 = vdwg.mxu0
  %v625 = vadd.f32 %v579, %v620
  %v626 = vxor.u32 %v625, 2147483648
  %v627 = vmul.f32 %v626, 1.442695
  %v628 = vpow.pop %v627
  %v629 = vadd.f32 %v628, 1.0
  %v630 = vrcp.pop %v629
  %v631 = vmul.f32 1.0, %v630
  %v632 = vadd.f32 %v620, %v344
  %634 = vrot.lane.b32.xlu0 %v632, 64
  %v635 = vpop.permute.xlu0 %634
  %v637 = vmul.f32 %v631, %v635
  %639 = vrot.lane.b32.xlu0 %v637, 64
  %v640 = vpop.permute.xlu0 %639
  %v642 = vadd.f32 %v579, %v640
  %v643 = vtanh.pop %v642
  %v644 = vsub.f32 1.0, %v631
  %646 = vrot.lane.b32.xlu0 %v643, 96
  %v647 = vpop.permute.xlu0 %646
  %v649 = vmul.f32 %v644, %v647
  %v650 = vmul.f32 %v631, %v568
  %v651 = vadd.f32 %v649, %v650
  %s652 = sadd.s32 %s241, 3
  %p653 = scmp.lt.s32.totalorder %s652, 8
  %s654 = scalar_select %p653, 1, 0
  %s655 = scvt.s32.f32 %s654
  %v656 = vstv %s655
  %v657 = vmul.f32 %v656, %v651
  %s658 = ssub.f32 1.0, %s655
  %v659 = vstv %s658
  %v660 = vmul.f32 %v659, %v568
  %v661 = vadd.f32 %v657, %v660
  %v662 = vpack.c.bf16 %v661, %v661
  %v664 = vunpack.c.l.b16 %v662
  %v665 = vpack.c.b16 %v664, %v664
  %666 = vrot.lane.b32.xlu0 %v665, 96
  %v667 = vpop.permute.xlu0 %666
  %s669 = scalar_lea.vmem %s6, 12
  %670 = vst.msk [vmem:[%s669] sm:$0xf] %vm390, %v667
  %s671 = scalar_lea.vmem [#allocation3], 32
  %v672 = vld [vmem:[%s671] sm:$0xff]
  %673 = vrot.lane.b32.xlu0 %v662, 96
  %v674 = vpop.permute.xlu0 %673
  %v676 = vsel %vm118, %v674, 0
  %678 = vmatprep.subr.bf16.mxu0 0
  %679 = vmatpush1.bf16.xpose.msra.mxu0 0
  %680 = vmatprep.subr.bf16.mxu0 0
  %681 = vmatpush1.bf16.xpose.msra.mxu0 0
  %682 = vmatprep.subr.bf16.mxu0 0
  %683 = vmatpush1.bf16.xpose.msra.mxu0 %v294
  %684 = vmatprep.subr.bf16.mxu0 0
  %685 = vmatpush1.bf16.xpose.msra.mxu0 %v291
  %686 = vmatprep.subr.bf16.mxu0 0
  %687 = vmatpush1.bf16.xpose.msra.mxu0 %v288
  %688 = vmatprep.subr.bf16.mxu0 0
  %689 = vmatpush1.bf16.xpose.msra.mxu0 %v285
  %690 = vmatprep.subr.bf16.mxu0 0
  %691 = vmatpush1.bf16.xpose.msra.mxu0 %v282
  %692 = vmatprep.subr.bf16.mxu0 0
  %693 = vmatpush1.bf16.xpose.msra.mxu0 %v279
  %694 = vmatprep.subr.bf16.mxu0 0
  %695 = vmatpush2.bf16.xpose.msra.mxu0 0
  %696 = vmatprep.subr.bf16.mxu0 0
  %697 = vmatpush2.bf16.xpose.msra.mxu0 0
  %698 = vmatprep.subr.bf16.mxu0 0
  %699 = vmatpush2.bf16.xpose.msra.mxu0 0
  %700 = vmatprep.subr.bf16.mxu0 0
  %701 = vmatpush2.bf16.xpose.msra.mxu0 0
  %702 = vmatprep.subr.bf16.mxu0 0
  %703 = vmatpush2.bf16.xpose.msra.mxu0 0
  %704 = vmatprep.subr.bf16.mxu0 0
  %705 = vmatpush2.bf16.xpose.msra.mxu0 0
  %706 = vmatprep.subr.bf16.mxu0 0
  %707 = vmatpush2.bf16.xpose.msra.mxu0 0
  %708 = vmatprep.subr.bf16.mxu0 0
  %709 = vmatpush2.bf16.xpose.msra.mxu0 0
  %710 = vmatprep.mubr.bf16.mxu0 0
  %711 = vmatmul.mubr.bf16.gmra.mxu0 %v676
  %v712 = vpop.f32.mrf.mxu0
  %v713 = vadd.f32 0.0, %v712
  %v714 = vpop.f32.mrf.mxu0
  %v715 = vpop.f32.mrf.mxu0
  %v716 = vpop.f32.mrf.mxu0
  %717 = vdwg.mxu0
  %v718 = vadd.f32 %v672, %v713
  %v719 = vxor.u32 %v718, 2147483648
  %v720 = vmul.f32 %v719, 1.442695
  %v721 = vpow.pop %v720
  %v722 = vadd.f32 %v721, 1.0
  %v723 = vrcp.pop %v722
  %v724 = vmul.f32 1.0, %v723
  %v725 = vadd.f32 %v713, %v344
  %727 = vrot.lane.b32.xlu0 %v725, 64
  %v728 = vpop.permute.xlu0 %727
  %v730 = vmul.f32 %v724, %v728
  %732 = vrot.lane.b32.xlu0 %v730, 64
  %v733 = vpop.permute.xlu0 %732
  %v735 = vadd.f32 %v672, %v733
  %v736 = vtanh.pop %v735
  %v737 = vsub.f32 1.0, %v724
  %739 = vrot.lane.b32.xlu0 %v736, 96
  %v740 = vpop.permute.xlu0 %739
  %v742 = vmul.f32 %v737, %v740
  %v743 = vmul.f32 %v724, %v661
  %v744 = vadd.f32 %v742, %v743
  %s745 = sadd.s32 %s241, 4
  %p746 = scmp.lt.s32.totalorder %s745, 8
  %s747 = scalar_select %p746, 1, 0
  %s748 = scvt.s32.f32 %s747
  %v749 = vstv %s748
  %v750 = vmul.f32 %v749, %v744
  %s751 = ssub.f32 1.0, %s748
  %v752 = vstv %s751
  %v753 = vmul.f32 %v752, %v661
  %v754 = vadd.f32 %v750, %v753
  %v755 = vpack.c.bf16 %v754, %v754
  %v757 = vunpack.c.l.b16 %v755
  %v758 = vpack.c.b16 %v757, %v757
  %759 = vrot.lane.b32.xlu0 %v758, 96
  %v760 = vpop.permute.xlu0 %759
  %s762 = scalar_lea.vmem %s6, 16
  %763 = vst.msk [vmem:[%s762] sm:$0xf] %vm390, %v760
  %s764 = scalar_lea.vmem [#allocation3], 40
  %v765 = vld [vmem:[%s764] sm:$0xff]
  %766 = vrot.lane.b32.xlu0 %v755, 96
  %v767 = vpop.permute.xlu0 %766
  %v769 = vsel %vm118, %v767, 0
  %771 = vmatprep.subr.bf16.mxu0 0
  %772 = vmatpush1.bf16.xpose.msra.mxu0 0
  %773 = vmatprep.subr.bf16.mxu0 0
  %774 = vmatpush1.bf16.xpose.msra.mxu0 0
  %775 = vmatprep.subr.bf16.mxu0 0
  %776 = vmatpush1.bf16.xpose.msra.mxu0 %v294
  %777 = vmatprep.subr.bf16.mxu0 0
  %778 = vmatpush1.bf16.xpose.msra.mxu0 %v291
  %779 = vmatprep.subr.bf16.mxu0 0
  %780 = vmatpush1.bf16.xpose.msra.mxu0 %v288
  %781 = vmatprep.subr.bf16.mxu0 0
  %782 = vmatpush1.bf16.xpose.msra.mxu0 %v285
  %783 = vmatprep.subr.bf16.mxu0 0
  %784 = vmatpush1.bf16.xpose.msra.mxu0 %v282
  %785 = vmatprep.subr.bf16.mxu0 0
  %786 = vmatpush1.bf16.xpose.msra.mxu0 %v279
  %787 = vmatprep.subr.bf16.mxu0 0
  %788 = vmatpush2.bf16.xpose.msra.mxu0 0
  %789 = vmatprep.subr.bf16.mxu0 0
  %790 = vmatpush2.bf16.xpose.msra.mxu0 0
  %791 = vmatprep.subr.bf16.mxu0 0
  %792 = vmatpush2.bf16.xpose.msra.mxu0 0
  %793 = vmatprep.subr.bf16.mxu0 0
  %794 = vmatpush2.bf16.xpose.msra.mxu0 0
  %795 = vmatprep.subr.bf16.mxu0 0
  %796 = vmatpush2.bf16.xpose.msra.mxu0 0
  %797 = vmatprep.subr.bf16.mxu0 0
  %798 = vmatpush2.bf16.xpose.msra.mxu0 0
  %799 = vmatprep.subr.bf16.mxu0 0
  %800 = vmatpush2.bf16.xpose.msra.mxu0 0
  %801 = vmatprep.subr.bf16.mxu0 0
  %802 = vmatpush2.bf16.xpose.msra.mxu0 0
  %803 = vmatprep.mubr.bf16.mxu0 0
  %804 = vmatmul.mubr.bf16.gmra.mxu0 %v769
  %v805 = vpop.f32.mrf.mxu0
  %v806 = vadd.f32 0.0, %v805
  %v807 = vpop.f32.mrf.mxu0
  %v808 = vpop.f32.mrf.mxu0
  %v809 = vpop.f32.mrf.mxu0
  %810 = vdwg.mxu0
  %v811 = vadd.f32 %v765, %v806
  %v812 = vxor.u32 %v811, 2147483648
  %v813 = vmul.f32 %v812, 1.442695
  %v814 = vpow.pop %v813
  %v815 = vadd.f32 %v814, 1.0
  %v816 = vrcp.pop %v815
  %v817 = vmul.f32 1.0, %v816
  %v818 = vadd.f32 %v806, %v344
  %820 = vrot.lane.b32.xlu0 %v818, 64
  %v821 = vpop.permute.xlu0 %820
  %v823 = vmul.f32 %v817, %v821
  %825 = vrot.lane.b32.xlu0 %v823, 64
  %v826 = vpop.permute.xlu0 %825
  %v828 = vadd.f32 %v765, %v826
  %v829 = vtanh.pop %v828
  %v830 = vsub.f32 1.0, %v817
  %832 = vrot.lane.b32.xlu0 %v829, 96
  %v833 = vpop.permute.xlu0 %832
  %v835 = vmul.f32 %v830, %v833
  %v836 = vmul.f32 %v817, %v754
  %v837 = vadd.f32 %v835, %v836
  %s838 = sadd.s32 %s241, 5
  %p839 = scmp.lt.s32.totalorder %s838, 8
  %s840 = scalar_select %p839, 1, 0
  %s841 = scvt.s32.f32 %s840
  %v842 = vstv %s841
  %v843 = vmul.f32 %v842, %v837
  %s844 = ssub.f32 1.0, %s841
  %v845 = vstv %s844
  %v846 = vmul.f32 %v845, %v754
  %v847 = vadd.f32 %v843, %v846
  %v848 = vpack.c.bf16 %v847, %v847
  %v850 = vunpack.c.l.b16 %v848
  %v851 = vpack.c.b16 %v850, %v850
  %852 = vrot.lane.b32.xlu0 %v851, 96
  %v853 = vpop.permute.xlu0 %852
  %s855 = scalar_lea.vmem %s6, 20
  %856 = vst.msk [vmem:[%s855] sm:$0xf] %vm390, %v853
  %s857 = scalar_lea.vmem [#allocation3], 48
  %v858 = vld [vmem:[%s857] sm:$0xff]
  %859 = vrot.lane.b32.xlu0 %v848, 96
  %v860 = vpop.permute.xlu0 %859
  %v862 = vsel %vm118, %v860, 0
  %864 = vmatprep.subr.bf16.mxu0 0
  %865 = vmatpush1.bf16.xpose.msra.mxu0 0
  %866 = vmatprep.subr.bf16.mxu0 0
  %867 = vmatpush1.bf16.xpose.msra.mxu0 0
  %868 = vmatprep.subr.bf16.mxu0 0
  %869 = vmatpush1.bf16.xpose.msra.mxu0 %v294
  %870 = vmatprep.subr.bf16.mxu0 0
  %871 = vmatpush1.bf16.xpose.msra.mxu0 %v291
  %872 = vmatprep.subr.bf16.mxu0 0
  %873 = vmatpush1.bf16.xpose.msra.mxu0 %v288
  %874 = vmatprep.subr.bf16.mxu0 0
  %875 = vmatpush1.bf16.xpose.msra.mxu0 %v285
  %876 = vmatprep.subr.bf16.mxu0 0
  %877 = vmatpush1.bf16.xpose.msra.mxu0 %v282
  %878 = vmatprep.subr.bf16.mxu0 0
  %879 = vmatpush1.bf16.xpose.msra.mxu0 %v279
  %880 = vmatprep.subr.bf16.mxu0 0
  %881 = vmatpush2.bf16.xpose.msra.mxu0 0
  %882 = vmatprep.subr.bf16.mxu0 0
  %883 = vmatpush2.bf16.xpose.msra.mxu0 0
  %884 = vmatprep.subr.bf16.mxu0 0
  %885 = vmatpush2.bf16.xpose.msra.mxu0 0
  %886 = vmatprep.subr.bf16.mxu0 0
  %887 = vmatpush2.bf16.xpose.msra.mxu0 0
  %888 = vmatprep.subr.bf16.mxu0 0
  %889 = vmatpush2.bf16.xpose.msra.mxu0 0
  %890 = vmatprep.subr.bf16.mxu0 0
  %891 = vmatpush2.bf16.xpose.msra.mxu0 0
  %892 = vmatprep.subr.bf16.mxu0 0
  %893 = vmatpush2.bf16.xpose.msra.mxu0 0
  %894 = vmatprep.subr.bf16.mxu0 0
  %895 = vmatpush2.bf16.xpose.msra.mxu0 0
  %896 = vmatprep.mubr.bf16.mxu0 0
  %897 = vmatmul.mubr.bf16.gmra.mxu0 %v862
  %v898 = vpop.f32.mrf.mxu0
  %v899 = vadd.f32 0.0, %v898
  %v900 = vpop.f32.mrf.mxu0
  %v901 = vpop.f32.mrf.mxu0
  %v902 = vpop.f32.mrf.mxu0
  %903 = vdwg.mxu0
  %v904 = vadd.f32 %v858, %v899
  %v905 = vxor.u32 %v904, 2147483648
  %v906 = vmul.f32 %v905, 1.442695
  %v907 = vpow.pop %v906
  %v908 = vadd.f32 %v907, 1.0
  %v909 = vrcp.pop %v908
  %v910 = vmul.f32 1.0, %v909
  %v911 = vadd.f32 %v899, %v344
  %913 = vrot.lane.b32.xlu0 %v911, 64
  %v914 = vpop.permute.xlu0 %913
  %v916 = vmul.f32 %v910, %v914
  %918 = vrot.lane.b32.xlu0 %v916, 64
  %v919 = vpop.permute.xlu0 %918
  %v921 = vadd.f32 %v858, %v919
  %v922 = vtanh.pop %v921
  %v923 = vsub.f32 1.0, %v910
  %925 = vrot.lane.b32.xlu0 %v922, 96
  %v926 = vpop.permute.xlu0 %925
  %v928 = vmul.f32 %v923, %v926
  %v929 = vmul.f32 %v910, %v847
  %v930 = vadd.f32 %v928, %v929
  %s931 = sadd.s32 %s241, 6
  %p932 = scmp.lt.s32.totalorder %s931, 8
  %s933 = scalar_select %p932, 1, 0
  %s934 = scvt.s32.f32 %s933
  %v935 = vstv %s934
  %v936 = vmul.f32 %v935, %v930
  %s937 = ssub.f32 1.0, %s934
  %v938 = vstv %s937
  %v939 = vmul.f32 %v938, %v847
  %v940 = vadd.f32 %v936, %v939
  %v941 = vpack.c.bf16 %v940, %v940
  %v943 = vunpack.c.l.b16 %v941
  %v944 = vpack.c.b16 %v943, %v943
  %945 = vrot.lane.b32.xlu0 %v944, 96
  %v946 = vpop.permute.xlu0 %945
  %s948 = scalar_lea.vmem %s6, 24
  %949 = vst.msk [vmem:[%s948] sm:$0xf] %vm390, %v946
  %s950 = scalar_lea.vmem [#allocation3], 56
  %v951 = vld [vmem:[%s950] sm:$0xff]
  %952 = vrot.lane.b32.xlu0 %v941, 96
  %v953 = vpop.permute.xlu0 %952
  %v955 = vsel %vm118, %v953, 0
  %957 = vmatprep.subr.bf16.mxu0 0
  %958 = vmatpush1.bf16.xpose.msra.mxu0 0
  %959 = vmatprep.subr.bf16.mxu0 0
  %960 = vmatpush1.bf16.xpose.msra.mxu0 0
  %961 = vmatprep.subr.bf16.mxu0 0
  %962 = vmatpush1.bf16.xpose.msra.mxu0 %v294
  %963 = vmatprep.subr.bf16.mxu0 0
  %964 = vmatpush1.bf16.xpose.msra.mxu0 %v291
  %965 = vmatprep.subr.bf16.mxu0 0
  %966 = vmatpush1.bf16.xpose.msra.mxu0 %v288
  %967 = vmatprep.subr.bf16.mxu0 0
  %968 = vmatpush1.bf16.xpose.msra.mxu0 %v285
  %969 = vmatprep.subr.bf16.mxu0 0
  %970 = vmatpush1.bf16.xpose.msra.mxu0 %v282
  %971 = vmatprep.subr.bf16.mxu0 0
  %972 = vmatpush1.bf16.xpose.msra.mxu0 %v279
  %973 = vmatprep.subr.bf16.mxu0 0
  %974 = vmatpush2.bf16.xpose.msra.mxu0 0
  %975 = vmatprep.subr.bf16.mxu0 0
  %976 = vmatpush2.bf16.xpose.msra.mxu0 0
  %977 = vmatprep.subr.bf16.mxu0 0
  %978 = vmatpush2.bf16.xpose.msra.mxu0 0
  %979 = vmatprep.subr.bf16.mxu0 0
  %980 = vmatpush2.bf16.xpose.msra.mxu0 0
  %981 = vmatprep.subr.bf16.mxu0 0
  %982 = vmatpush2.bf16.xpose.msra.mxu0 0
  %983 = vmatprep.subr.bf16.mxu0 0
  %984 = vmatpush2.bf16.xpose.msra.mxu0 0
  %985 = vmatprep.subr.bf16.mxu0 0
  %986 = vmatpush2.bf16.xpose.msra.mxu0 0
  %987 = vmatprep.subr.bf16.mxu0 0
  %988 = vmatpush2.bf16.xpose.msra.mxu0 0
  %989 = vmatprep.mubr.bf16.mxu0 0
  %990 = vmatmul.mubr.bf16.gmra.mxu0 %v955
  %v991 = vpop.f32.mrf.mxu0
  %v992 = vadd.f32 0.0, %v991
  %v993 = vpop.f32.mrf.mxu0
  %v994 = vpop.f32.mrf.mxu0
  %v995 = vpop.f32.mrf.mxu0
  %996 = vdwg.mxu0
  %v997 = vadd.f32 %v951, %v992
  %v998 = vxor.u32 %v997, 2147483648
  %v999 = vmul.f32 %v998, 1.442695
  %v1000 = vpow.pop %v999
  %v1001 = vadd.f32 %v1000, 1.0
  %v1002 = vrcp.pop %v1001
  %v1003 = vmul.f32 1.0, %v1002
  %v1004 = vadd.f32 %v992, %v344
  %1006 = vrot.lane.b32.xlu0 %v1004, 64
  %v1007 = vpop.permute.xlu0 %1006
  %v1009 = vmul.f32 %v1003, %v1007
  %1011 = vrot.lane.b32.xlu0 %v1009, 64
  %v1012 = vpop.permute.xlu0 %1011
  %v1014 = vadd.f32 %v951, %v1012
  %v1015 = vtanh.pop %v1014
  %v1016 = vsub.f32 1.0, %v1003
  %1018 = vrot.lane.b32.xlu0 %v1015, 96
  %v1019 = vpop.permute.xlu0 %1018
  %v1021 = vmul.f32 %v1016, %v1019
  %v1022 = vmul.f32 %v1003, %v940
  %v1023 = vadd.f32 %v1021, %v1022
  %s1024 = sadd.s32 %s241, 7
  %p1025 = scmp.lt.s32.totalorder %s1024, 8
  %s1026 = scalar_select %p1025, 1, 0
  %s1027 = scvt.s32.f32 %s1026
  %v1028 = vstv %s1027
  %v1029 = vmul.f32 %v1028, %v1023
  %s1030 = ssub.f32 1.0, %s1027
  %v1031 = vstv %s1030
  %v1032 = vmul.f32 %v1031, %v940
  %v1033 = vadd.f32 %v1029, %v1032
  %v1034 = vpack.c.bf16 %v1033, %v1033
  %v1036 = vunpack.c.l.b16 %v1034
  %v1037 = vpack.c.b16 %v1036, %v1036
  %1038 = vrot.lane.b32.xlu0 %v1037, 96
  %v1039 = vpop.permute.xlu0 %1038
  %s1041 = scalar_lea.vmem %s6, 28
  %1042 = vst.msk [vmem:[%s1041] sm:$0xf] %vm390, %v1039
  %1044 = vrot.lane.b32.xlu0 %v1033, 96
  %v1045 = vpop.permute.xlu0 %1044
  %1047 = vst.msk [vmem:[#allocation2] sm:$0xff] %vm118, %v1045
  %1048 = vst.msk [vmem:[%s7] sm:$0xff] %vm118, %v1045
  // Predicated region
  $region30: #{decoder_rnn_forward.3} parent=0 // pred_check
    _
  $region31: #{decoder_rnn_forward.3} parent=0 // pred_check_branch
    %1050 = sbr.rel (0) target = $region33
  $region32: #{decoder_rnn_forward.3} parent=0 // pred_region
    _
  $region33: #{decoder_rnn_forward.3} parent=0 // pred_fallthru
    _
  // Predicated region
  $region34: #{decoder_rnn_forward.3} parent=0 // pred_check
    _
  $region35: #{decoder_rnn_forward.3} parent=0 // pred_check_branch
    %1052 = sbr.rel (0) target = $region37
  $region36: #{decoder_rnn_forward.3} parent=0 // pred_region
    _
  $region37: #{decoder_rnn_forward.3} parent=0 // pred_fallthru
    _
  // Predicated region
  $region38: #{decoder_rnn_forward.3} parent=0 // pred_check
    _
  $region39: #{decoder_rnn_forward.3} parent=0 // pred_check_branch
    %1054 = sbr.rel (0) target = $region41
  $region40: #{decoder_rnn_forward.3} parent=0 // pred_region
    _
  $region41: #{decoder_rnn_forward.3} parent=0 // pred_fallthru
    _
  // Predicated region
  $region42: #{decoder_rnn_forward.3} parent=0 // pred_check
    _
  $region43: #{decoder_rnn_forward.3} parent=0 // pred_check_branch
    %1056 = sbr.rel (0) target = $region45
  $region44: #{decoder_rnn_forward.3} parent=0 // pred_region
    _
  $region45: #{decoder_rnn_forward.3} parent=0 // pred_fallthru
    _

</llo_original>
